<compile_context>
chip_gen: v7x
topology: tpu7x:2x2x1
jax: 0.10.0
libtpu: 0.0.40
codegen_flags: <defaults>
</compile_context>

<pallas_src>
import numpy as np
import jax
import jax.numpy as jnp
from jax import lax
from jax.experimental import pallas as pl
from jax.experimental.pallas import tpu as pltpu

VMEM_SPEC = pl.BlockSpec(memory_space=pltpu.MemorySpace.VMEM)


def _round_up(x, m):
    return (x + m - 1) // m * m


def _pad_to(a, shape):
    return jnp.pad(a, tuple((0, t - s) for s, t in zip(a.shape, shape)))


# ---------------------------------------------------------------------------
# Pallas kernels
# ---------------------------------------------------------------------------
def _conv_relu_pool_kernel(p_ref, w_ref, b_ref, o_ref):
    """Fused conv (im2col matmul) + bias + ReLU + 2x2 maxpool for one row tile.

    p_ref: (1, G*T, Kp) - pool-window-stacked patches (G=4 groups of T rows)
    w_ref: (Kp, Cp)     - conv weight, (kh,kw,cin)-flattened, zero-padded
    b_ref: (1, Cp)
    o_ref: (T, Cp)      - pooled output rows (lane-dense, Cp = 128)
    """
    t = o_ref.shape[0]
    y = jnp.dot(p_ref[0], w_ref[...], preferred_element_type=jnp.float32)
    y = jnp.maximum(y + b_ref[...], 0.0)
    g = y.shape[0] // t
    acc = y[0:t]
    for j in range(1, g):                      # max over the 4 pool positions
        acc = jnp.maximum(acc, y[j * t:(j + 1) * t])
    o_ref[...] = acc


def _classifier_kernel(x_ref, w1_ref, b1_ref, w2_ref, b2_ref, w3_ref, b3_ref, o_ref):
    """fc1 -> ReLU -> fc2 -> ReLU -> fc3, fully fused, 128-lane padded."""
    h = jnp.dot(x_ref[...], w1_ref[...], preferred_element_type=jnp.float32) + b1_ref[...]
    h = jnp.maximum(h, 0.0)
    h = jnp.dot(h, w2_ref[...], preferred_element_type=jnp.float32) + b2_ref[...]
    h = jnp.maximum(h, 0.0)
    o_ref[...] = jnp.dot(h, w3_ref[...], preferred_element_type=jnp.float32) + b3_ref[...]


# ---------------------------------------------------------------------------
# Conv + ReLU + pool wrapper
# ---------------------------------------------------------------------------
def conv_relu_pool(x_nhwc, w_oihw, b, *, ksize=5, pool=2, tile_target=512):
    B, H, W, C = x_nhwc.shape
    Cout = w_oihw.shape[0]
    OH, OW = H - ksize + 1, W - ksize + 1
    PH, PW = OH // pool, OW // pool
    N = B * PH * PW                    # pooled output pixels
    K = ksize * ksize * C              # contraction (kh, kw, cin)
    KP = _round_up(K, 128)             # lane-aligned contraction
    CP = _round_up(Cout, 128)          # lane-dense output channels
    TILE = min(_round_up(N, 8), tile_target)   # VMEM-friendly row tile (mult of 8)
    NGP = _round_up(N, TILE)
    nblk = NGP // TILE

    # pooling-grouped im2col via static strided slices (no gather):
    # slab[dh,dw][b,ph,pw, (kh,kw,c)] = x[b, pool*ph+dh+kh, pool*pw+dw+kw, c]
    slabs = []
    for dh in range(pool):
        for dw in range(pool):
            taps = []
            for kh in range(ksize):
                for kw in range(ksize):
                    r0, c0 = dh + kh, dw + kw
                    taps.append(
                        x_nhwc[:, r0:r0 + pool * (PH - 1) + 1:pool,
                               c0:c0 + pool * (PW - 1) + 1:pool, :])  # (B,PH,PW,C)
            slabs.append(jnp.concatenate(taps, axis=-1).reshape(N, K))
    patches = jnp.stack(slabs, axis=0)                       # (4, N, K)
    patches = jnp.pad(patches, ((0, 0), (0, NGP - N), (0, KP - K)))
    # block layout: each grid block carries its 4 pool-window row groups
    patches = patches.reshape(pool * pool, nblk, TILE, KP).transpose(1, 0, 2, 3)
    patches = patches.reshape(nblk, pool * pool * TILE, KP)  # (nblk, 4*T, Kp)

    # torch conv weight (Cout, Cin, KH, KW) -> (KH, KW, Cin, Cout) -> (K, Cout)
    w_mat = jnp.transpose(w_oihw, (2, 3, 1, 0)).reshape(K, Cout)
    w_mat = _pad_to(w_mat, (KP, CP))
    b_mat = _pad_to(b.reshape(1, Cout), (1, CP))

    out = pl.pallas_call(
        _conv_relu_pool_kernel,
        out_shape=jax.ShapeDtypeStruct((NGP, CP), jnp.float32),
        grid=(nblk,),
        in_specs=[pl.BlockSpec((1, pool * pool * TILE, KP), lambda i: (i, 0, 0)),
                  pl.BlockSpec((KP, CP), lambda i: (0, 0)),
                  pl.BlockSpec((1, CP), lambda i: (0, 0))],
        out_specs=pl.BlockSpec((TILE, CP), lambda i: (i, 0)),
        compiler_params=pltpu.CompilerParams(dimension_semantics=("parallel",)),
    )(patches, w_mat, b_mat)

    return out[:N, :Cout].reshape(B, PH, PW, Cout)


# ---------------------------------------------------------------------------
# Full forward
# ---------------------------------------------------------------------------
def cnn_forward(x_nchw, p):
    x = jnp.transpose(x_nchw, (0, 2, 3, 1))                   # NCHW -> NHWC
    x = conv_relu_pool(x, p["conv1_w"], p["conv1_b"])         # (B, 14, 14, 6)
    x = conv_relu_pool(x, p["conv2_w"], p["conv2_b"])         # (B, 5, 5, 16)
    B = x.shape[0]
    BP = _round_up(B, 8)                                      # sublane-aligned rows
    F_IN, FP_IN = 5 * 5 * 16, _round_up(5 * 5 * 16, 128)      # 400 -> 512 lanes
    xf = _pad_to(x.reshape(B, F_IN), (BP, FP_IN))             # NHWC flatten, free

    # Fold torch's NCHW (c,h,w) flatten order into fc1_w (no activation perm),
    # and zero-pad all fc dims to 128 lanes; padded channels stay exactly 0.
    w1 = p["fc1_w"].reshape(16, 5, 5, 120).transpose(1, 2, 0, 3).reshape(F_IN, 120)
    w1 = _pad_to(w1, (FP_IN, 128))
    b1 = _pad_to(p["fc1_b"].reshape(1, -1), (1, 128))
    w2 = _pad_to(p["fc2_w"], (128, 128))
    b2 = _pad_to(p["fc2_b"].reshape(1, -1), (1, 128))
    w3 = _pad_to(p["fc3_w"], (128, 128))
    b3 = _pad_to(p["fc3_b"].reshape(1, -1), (1, 128))

    out = pl.pallas_call(
        _classifier_kernel,
        out_shape=jax.ShapeDtypeStruct((BP, 128), jnp.float32),
        in_specs=[VMEM_SPEC] * 7,
        out_specs=VMEM_SPEC,
    )(xf, w1, b1, w2, b2, w3, b3)
    return out[:B, :10]


# ---------------------------------------------------------------------------
# Pure-JAX reference (torch-style NCHW conv) for validation
# ---------------------------------------------------------------------------
def reference_forward(x_nchw, p):
    dn = ("NCHW", "OIHW", "NCHW")

    def conv(x, w, b):
        y = lax.conv_general_dilated(x, w, (1, 1), "VALID", dimension_numbers=dn,
                                     precision=lax.Precision.HIGHEST)
        return y + b[None, :, None, None]

    def maxpool(x):
        return lax.reduce_window(x, jnp.float32(-jnp.inf), lax.max,
                                 (1, 1, 2, 2), (1, 1, 2, 2), "VALID")

    x = maxpool(jnp.maximum(conv(x_nchw, p["conv1_w"], p["conv1_b"]), 0.0))
    x = maxpool(jnp.maximum(conv(x, p["conv2_w"], p["conv2_b"]), 0.0))
    x = x.reshape(x.shape[0], -1)
    x = jnp.maximum(x @ p["fc1_w"] + p["fc1_b"], 0.0)
    x = jnp.maximum(x @ p["fc2_w"] + p["fc2_b"], 0.0)
    return x @ p["fc3_w"] + p["fc3_b"]


# ---------------------------------------------------------------------------
# Deterministic parameter init (same shapes as the nn.Module; FC weights stored
# as (in, out) so forward is x @ W + b).
# ---------------------------------------------------------------------------
def init_params(key):
    ks = jax.random.split(key, 10)

    def init(k, shape, fan_in):
        return (jax.random.normal(k, shape, jnp.float32) / np.sqrt(fan_in)).astype(jnp.float32)

    return {
        "conv1_w": init(ks[0], (6, 3, 5, 5), 3 * 25),
        "conv1_b": init(ks[1], (6,), 3 * 25),
        "conv2_w": init(ks[2], (16, 6, 5, 5), 6 * 25),
        "conv2_b": init(ks[3], (16,), 6 * 25),
        "fc1_w": init(ks[4], (400, 120), 400),
        "fc1_b": init(ks[5], (120,), 400),
        "fc2_w": init(ks[6], (120, 84), 120),
        "fc2_b": init(ks[7], (84,), 120),
        "fc3_w": init(ks[8], (84, 10), 84),
        "fc3_b": init(ks[9], (10,), 84),
    }


if __name__ == "__main__":
    key = jax.random.PRNGKey(0)
    kx, kp = jax.random.split(key)
    x = jax.random.normal(kx, (2, 3, 32, 32), jnp.float32)   # batch=2, CIFAR-sized input
    params = init_params(kp)

    out = jax.jit(cnn_forward)(x, params)
    out = jax.block_until_ready(out)
    assert out.shape == (2, 10) and out.dtype == jnp.float32

    ref = reference_forward(x, params)
    np.testing.assert_allclose(np.asarray(out), np.asarray(ref), rtol=2e-2, atol=2e-2)

    print("KERNEL_OK")
</pallas_src>

<mosaic_0001>
module attributes {stable_mosaic.version = 11 : i64} {
  func.func @_conv_relu_pool_kernel(%arg0: i32, %arg1: memref<1x1568x128xf32, #tpu.memory_space<vmem>>, %arg2: memref<128x128xf32, #tpu.memory_space<vmem>>, %arg3: memref<1x128xf32, #tpu.memory_space<vmem>>, %arg4: memref<392x128xf32, #tpu.memory_space<vmem>>) attributes {dimension_semantics = [#tpu.dimension_semantics<parallel>], iteration_bounds = array<i64: 1>, scalar_prefetch = 0 : i64, scratch_operands = 0 : i64, tpu.core_type = #tpu.core_type<tc>, window_params = [{transform_indices = @transform_0, window_bounds = array<i64: 1, 1568, 128>}, {pipeline_mode = #tpu.pipeline_mode<synchronous>, transform_indices = @transform_1, window_bounds = array<i64: 128, 128>}, {pipeline_mode = #tpu.pipeline_mode<synchronous>, transform_indices = @transform_2, window_bounds = array<i64: 1, 128>}, {transform_indices = @transform_3, window_bounds = array<i64: 392, 128>}]} {
    %c0 = arith.constant 0 : index
    %c0_0 = arith.constant 0 : index
    %c0_1 = arith.constant 0 : index
    %0 = vector.load %arg1[%c0, %c0_0, %c0_1] : memref<1x1568x128xf32, #tpu.memory_space<vmem>>, vector<1x1568x128xf32>
    %1 = vector.shape_cast %0 : vector<1x1568x128xf32> to vector<1568x128xf32>
    %c0_2 = arith.constant 0 : index
    %c0_3 = arith.constant 0 : index
    %2 = vector.load %arg2[%c0_2, %c0_3] : memref<128x128xf32, #tpu.memory_space<vmem>>, vector<128x128xf32>
    %cst = arith.constant dense<0.000000e+00> : vector<1568x128xf32>
    %3 = tpu.matmul %1, %2, %cst {dimension_numbers = #tpu.dot_dimension_numbers<[1], [0], [0], [1], [0, 0, 1, 1], [], []>} : vector<1568x128xf32>, vector<128x128xf32>, vector<1568x128xf32> -> vector<1568x128xf32>
    %c0_4 = arith.constant 0 : index
    %c0_5 = arith.constant 0 : index
    %4 = vector.load %arg3[%c0_4, %c0_5] : memref<1x128xf32, #tpu.memory_space<vmem>>, vector<1x128xf32>
    %5 = vector.broadcast %4 : vector<1x128xf32> to vector<1568x128xf32>
    %6 = arith.addf %3, %5 : vector<1568x128xf32>
    %cst_6 = arith.constant 0.000000e+00 : f32
    %7 = vector.broadcast %cst_6 : f32 to vector<1568x128xf32>
    %8 = arith.maximumf %6, %7 : vector<1568x128xf32>
    %9 = vector.extract_strided_slice %8 {offsets = [0, 0], sizes = [392, 128], strides = [1, 1]} : vector<1568x128xf32> to vector<392x128xf32>
    %10 = vector.extract_strided_slice %8 {offsets = [392, 0], sizes = [392, 128], strides = [1, 1]} : vector<1568x128xf32> to vector<392x128xf32>
    %11 = arith.maximumf %9, %10 : vector<392x128xf32>
    %12 = vector.extract_strided_slice %8 {offsets = [784, 0], sizes = [392, 128], strides = [1, 1]} : vector<1568x128xf32> to vector<392x128xf32>
    %13 = arith.maximumf %11, %12 : vector<392x128xf32>
    %14 = vector.extract_strided_slice %8 {offsets = [1176, 0], sizes = [392, 128], strides = [1, 1]} : vector<1568x128xf32> to vector<392x128xf32>
    %15 = arith.maximumf %13, %14 : vector<392x128xf32>
    %c0_7 = arith.constant 0 : index
    %c0_8 = arith.constant 0 : index
    %16 = vector.load %arg4[%c0_7, %c0_8] : memref<392x128xf32, #tpu.memory_space<vmem>>, vector<392x128xf32>
    tpu.vector_store %arg4[%c0_7, %c0_8], %15 {strides = array<i32>} : memref<392x128xf32, #tpu.memory_space<vmem>>, vector<392x128xf32>,
    return
  }
  func.func @transform_0(%arg0: i32) -> (i32, i32, i32) {
    %c0_i32 = arith.constant 0 : i32
    %c0_i32_0 = arith.constant 0 : i32
    %c0_i32_1 = arith.constant 0 : i32
    return %arg0, %c0_i32, %c0_i32_0 : i32, i32, i32
  }
  func.func @transform_1(%arg0: i32) -> (i32, i32) {
    %c0_i32 = arith.constant 0 : i32
    %c0_i32_0 = arith.constant 0 : i32
    %c0_i32_1 = arith.constant 0 : i32
    return %c0_i32, %c0_i32_0 : i32, i32
  }
  func.func @transform_2(%arg0: i32) -> (i32, i32) {
    %c0_i32 = arith.constant 0 : i32
    %c0_i32_0 = arith.constant 0 : i32
    %c0_i32_1 = arith.constant 0 : i32
    return %c0_i32, %c0_i32_0 : i32, i32
  }
  func.func @transform_3(%arg0: i32) -> (i32, i32) {
    %c0_i32 = arith.constant 0 : i32
    %c0_i32_0 = arith.constant 0 : i32
    return %arg0, %c0_i32 : i32, i32
  }
}

module attributes {stable_mosaic.version = 11 : i64} {
  func.func @_conv_relu_pool_kernel(%arg0: i32, %arg1: memref<1x224x256xf32, #tpu.memory_space<vmem>>, %arg2: memref<256x128xf32, #tpu.memory_space<vmem>>, %arg3: memref<1x128xf32, #tpu.memory_space<vmem>>, %arg4: memref<56x128xf32, #tpu.memory_space<vmem>>) attributes {dimension_semantics = [#tpu.dimension_semantics<parallel>], iteration_bounds = array<i64: 1>, scalar_prefetch = 0 : i64, scratch_operands = 0 : i64, tpu.core_type = #tpu.core_type<tc>, window_params = [{transform_indices = @transform_0, window_bounds = array<i64: 1, 224, 256>}, {pipeline_mode = #tpu.pipeline_mode<synchronous>, transform_indices = @transform_1, window_bounds = array<i64: 256, 128>}, {pipeline_mode = #tpu.pipeline_mode<synchronous>, transform_indices = @transform_2, window_bounds = array<i64: 1, 128>}, {transform_indices = @transform_3, window_bounds = array<i64: 56, 128>}]} {
    %c0 = arith.constant 0 : index
    %c0_0 = arith.constant 0 : index
    %c0_1 = arith.constant 0 : index
    %0 = vector.load %arg1[%c0, %c0_0, %c0_1] : memref<1x224x256xf32, #tpu.memory_space<vmem>>, vector<1x224x256xf32>
    %1 = vector.shape_cast %0 : vector<1x224x256xf32> to vector<224x256xf32>
    %c0_2 = arith.constant 0 : index
    %c0_3 = arith.constant 0 : index
    %2 = vector.load %arg2[%c0_2, %c0_3] : memref<256x128xf32, #tpu.memory_space<vmem>>, vector<256x128xf32>
    %cst = arith.constant dense<0.000000e+00> : vector<224x128xf32>
    %3 = tpu.matmul %1, %2, %cst {dimension_numbers = #tpu.dot_dimension_numbers<[1], [0], [0], [1], [0, 0, 1, 1], [], []>} : vector<224x256xf32>, vector<256x128xf32>, vector<224x128xf32> -> vector<224x128xf32>
    %c0_4 = arith.constant 0 : index
    %c0_5 = arith.constant 0 : index
    %4 = vector.load %arg3[%c0_4, %c0_5] : memref<1x128xf32, #tpu.memory_space<vmem>>, vector<1x128xf32>
    %5 = vector.broadcast %4 : vector<1x128xf32> to vector<224x128xf32>
    %6 = arith.addf %3, %5 : vector<224x128xf32>
    %cst_6 = arith.constant 0.000000e+00 : f32
    %7 = vector.broadcast %cst_6 : f32 to vector<224x128xf32>
    %8 = arith.maximumf %6, %7 : vector<224x128xf32>
    %9 = vector.extract_strided_slice %8 {offsets = [0, 0], sizes = [56, 128], strides = [1, 1]} : vector<224x128xf32> to vector<56x128xf32>
    %10 = vector.extract_strided_slice %8 {offsets = [56, 0], sizes = [56, 128], strides = [1, 1]} : vector<224x128xf32> to vector<56x128xf32>
    %11 = arith.maximumf %9, %10 : vector<56x128xf32>
    %12 = vector.extract_strided_slice %8 {offsets = [112, 0], sizes = [56, 128], strides = [1, 1]} : vector<224x128xf32> to vector<56x128xf32>
    %13 = arith.maximumf %11, %12 : vector<56x128xf32>
    %14 = vector.extract_strided_slice %8 {offsets = [168, 0], sizes = [56, 128], strides = [1, 1]} : vector<224x128xf32> to vector<56x128xf32>
    %15 = arith.maximumf %13, %14 : vector<56x128xf32>
    %c0_7 = arith.constant 0 : index
    %c0_8 = arith.constant 0 : index
    %16 = vector.load %arg4[%c0_7, %c0_8] : memref<56x128xf32, #tpu.memory_space<vmem>>, vector<56x128xf32>
    tpu.vector_store %arg4[%c0_7, %c0_8], %15 {strides = array<i32>} : memref<56x128xf32, #tpu.memory_space<vmem>>, vector<56x128xf32>,
    return
  }
  func.func @transform_0(%arg0: i32) -> (i32, i32, i32) {
    %c0_i32 = arith.constant 0 : i32
    %c0_i32_0 = arith.constant 0 : i32
    %c0_i32_1 = arith.constant 0 : i32
    return %arg0, %c0_i32, %c0_i32_0 : i32, i32, i32
  }
  func.func @transform_1(%arg0: i32) -> (i32, i32) {
    %c0_i32 = arith.constant 0 : i32
    %c0_i32_0 = arith.constant 0 : i32
    %c0_i32_1 = arith.constant 0 : i32
    return %c0_i32, %c0_i32_0 : i32, i32
  }
  func.func @transform_2(%arg0: i32) -> (i32, i32) {
    %c0_i32 = arith.constant 0 : i32
    %c0_i32_0 = arith.constant 0 : i32
    %c0_i32_1 = arith.constant 0 : i32
    return %c0_i32, %c0_i32_0 : i32, i32
  }
  func.func @transform_3(%arg0: i32) -> (i32, i32) {
    %c0_i32 = arith.constant 0 : i32
    %c0_i32_0 = arith.constant 0 : i32
    return %arg0, %c0_i32 : i32, i32
  }
}

module attributes {stable_mosaic.version = 11 : i64} {
  func.func @_classifier_kernel(%arg0: memref<8x512xf32, #tpu.memory_space<vmem>>, %arg1: memref<512x128xf32, #tpu.memory_space<vmem>>, %arg2: memref<1x128xf32, #tpu.memory_space<vmem>>, %arg3: memref<128x128xf32, #tpu.memory_space<vmem>>, %arg4: memref<1x128xf32, #tpu.memory_space<vmem>>, %arg5: memref<128x128xf32, #tpu.memory_space<vmem>>, %arg6: memref<1x128xf32, #tpu.memory_space<vmem>>, %arg7: memref<8x128xf32, #tpu.memory_space<vmem>>) attributes {dimension_semantics = [], scalar_prefetch = 0 : i64, scratch_operands = 0 : i64, tpu.core_type = #tpu.core_type<tc>} {
    %c0 = arith.constant 0 : index
    %c0_0 = arith.constant 0 : index
    %0 = vector.load %arg0[%c0, %c0_0] : memref<8x512xf32, #tpu.memory_space<vmem>>, vector<8x512xf32>
    %c0_1 = arith.constant 0 : index
    %c0_2 = arith.constant 0 : index
    %1 = vector.load %arg1[%c0_1, %c0_2] : memref<512x128xf32, #tpu.memory_space<vmem>>, vector<512x128xf32>
    %cst = arith.constant dense<0.000000e+00> : vector<8x128xf32>
    %2 = tpu.matmul %0, %1, %cst {dimension_numbers = #tpu.dot_dimension_numbers<[1], [0], [0], [1], [0, 0, 1, 1], [], []>} : vector<8x512xf32>, vector<512x128xf32>, vector<8x128xf32> -> vector<8x128xf32>
    %c0_3 = arith.constant 0 : index
    %c0_4 = arith.constant 0 : index
    %3 = vector.load %arg2[%c0_3, %c0_4] : memref<1x128xf32, #tpu.memory_space<vmem>>, vector<1x128xf32>
    %4 = vector.broadcast %3 : vector<1x128xf32> to vector<8x128xf32>
    %5 = arith.addf %2, %4 : vector<8x128xf32>
    %cst_5 = arith.constant 0.000000e+00 : f32
    %6 = vector.broadcast %cst_5 : f32 to vector<8x128xf32>
    %7 = arith.maximumf %5, %6 : vector<8x128xf32>
    %c0_6 = arith.constant 0 : index
    %c0_7 = arith.constant 0 : index
    %8 = vector.load %arg3[%c0_6, %c0_7] : memref<128x128xf32, #tpu.memory_space<vmem>>, vector<128x128xf32>
    %cst_8 = arith.constant dense<0.000000e+00> : vector<8x128xf32>
    %9 = tpu.matmul %7, %8, %cst_8 {dimension_numbers = #tpu.dot_dimension_numbers<[1], [0], [0], [1], [0, 0, 1, 1], [], []>} : vector<8x128xf32>, vector<128x128xf32>, vector<8x128xf32> -> vector<8x128xf32>
    %c0_9 = arith.constant 0 : index
    %c0_10 = arith.constant 0 : index
    %10 = vector.load %arg4[%c0_9, %c0_10] : memref<1x128xf32, #tpu.memory_space<vmem>>, vector<1x128xf32>
    %11 = vector.broadcast %10 : vector<1x128xf32> to vector<8x128xf32>
    %12 = arith.addf %9, %11 : vector<8x128xf32>
    %cst_11 = arith.constant 0.000000e+00 : f32
    %13 = vector.broadcast %cst_11 : f32 to vector<8x128xf32>
    %14 = arith.maximumf %12, %13 : vector<8x128xf32>
    %c0_12 = arith.constant 0 : index
    %c0_13 = arith.constant 0 : index
    %15 = vector.load %arg5[%c0_12, %c0_13] : memref<128x128xf32, #tpu.memory_space<vmem>>, vector<128x128xf32>
    %cst_14 = arith.constant dense<0.000000e+00> : vector<8x128xf32>
    %16 = tpu.matmul %14, %15, %cst_14 {dimension_numbers = #tpu.dot_dimension_numbers<[1], [0], [0], [1], [0, 0, 1, 1], [], []>} : vector<8x128xf32>, vector<128x128xf32>, vector<8x128xf32> -> vector<8x128xf32>
    %c0_15 = arith.constant 0 : index
    %c0_16 = arith.constant 0 : index
    %17 = vector.load %arg6[%c0_15, %c0_16] : memref<1x128xf32, #tpu.memory_space<vmem>>, vector<1x128xf32>
    %18 = vector.broadcast %17 : vector<1x128xf32> to vector<8x128xf32>
    %19 = arith.addf %16, %18 : vector<8x128xf32>
    %c0_17 = arith.constant 0 : index
    %c0_18 = arith.constant 0 : index
    %20 = vector.load %arg7[%c0_17, %c0_18] : memref<8x128xf32, #tpu.memory_space<vmem>>, vector<8x128xf32>
    tpu.vector_store %arg7[%c0_17, %c0_18], %19 {strides = array<i32>} : memref<8x128xf32, #tpu.memory_space<vmem>>, vector<8x128xf32>,
    return
  }
}

</mosaic_0001>

<llo_original>
// kernel: cnn_forward.3
$region0: #{cnn_forward.3}
  #allocation0 [shape = 'u32[]', space=smem, size = 0x4, offset = 0x4, fixed_abs, tag = 'smem constant byte address 0x4 - core index']
  #allocation1 [shape = 'u32[144,128]{1,0:T(1,128)}', space=vmem, size = 0x12000, scoped, tag = 'internal scratch']
  %s0 = inlined_call_operand.vmem [shape: f32[1,1568,128], index: 0, kind: input, shape index: {}]
  %s1 = inlined_call_operand.vmem [shape: f32[128,128], index: 1, kind: input, shape index: {}]
  %s2 = inlined_call_operand.vmem [shape: f32[1,128], index: 2, kind: input, shape index: {}]
  %s3 = inlined_call_operand.vmem [shape: f32[392,128], index: 3, kind: output, shape index: {}]
  %s4 = sld [smem:[#allocation0]]
  $region22: #{cnn_forward.3} parent=0
    _
  %s6 = ssub.s32 1, %s4
  %s7 = scalar_select 0, %s6, %s4
  // Predicated region
  $region2: #{cnn_forward.3} parent=0 // pred_check
    _
  $region3: #{cnn_forward.3} parent=0 // pred_check_branch
    %9 = sbr.rel (0) target = $region5
  $region4: #{cnn_forward.3} parent=0 // pred_region
    _
  $region5: #{cnn_forward.3} parent=0 // pred_fallthru
    _
  // Predicated region
  $region6: #{cnn_forward.3} parent=0 // pred_check
    _
  $region7: #{cnn_forward.3} parent=0 // pred_check_branch
    %11 = sbr.rel (0) target = $region9
  $region8: #{cnn_forward.3} parent=0 // pred_region
    _
  $region9: #{cnn_forward.3} parent=0 // pred_fallthru
    _
  // Predicated region
  $region10: #{cnn_forward.3} parent=0 // pred_check
    _
  $region11: #{cnn_forward.3} parent=0 // pred_check_branch
    %13 = sbr.rel (0) target = $region13
  $region12: #{cnn_forward.3} parent=0 // pred_region
    _
  $region13: #{cnn_forward.3} parent=0 // pred_fallthru
    _
  %v14 = vld [vmem:[%s0] sm:$0xff]
  %v15 = vld [vmem:[%s0 + $0x8] sm:$0xff]
  %v16 = vld [vmem:[%s0 + $0x10] sm:$0xff]
  %v17 = vld [vmem:[%s0 + $0x18] sm:$0xff]
  %v18 = vld [vmem:[%s0 + $0x20] sm:$0xff]
  %v19 = vld [vmem:[%s0 + $0x28] sm:$0xff]
  %v20 = vld [vmem:[%s0 + $0x30] sm:$0xff]
  %v21 = vld [vmem:[%s0 + $0x38] sm:$0xff]
  %v22 = vld [vmem:[%s0 + $0x40] sm:$0xff]
  %v23 = vld [vmem:[%s0 + $0x48] sm:$0xff]
  %v24 = vld [vmem:[%s0 + $0x50] sm:$0xff]
  %v25 = vld [vmem:[%s0 + $0x58] sm:$0xff]
  %v26 = vld [vmem:[%s0 + $0x60] sm:$0xff]
  %v27 = vld [vmem:[%s0 + $0x68] sm:$0xff]
  %v28 = vld [vmem:[%s0 + $0x70] sm:$0xff]
  %v29 = vld [vmem:[%s0 + $0x78] sm:$0xff]
  %v30 = vld [vmem:[%s0 + $0x80] sm:$0xff]
  %v31 = vld [vmem:[%s0 + $0x88] sm:$0xff]
  %v32 = vld [vmem:[%s0 + $0x90] sm:$0xff]
  %v33 = vld [vmem:[%s0 + $0x98] sm:$0xff]
  %v34 = vld [vmem:[%s0 + $0xa0] sm:$0xff]
  %v35 = vld [vmem:[%s0 + $0xa8] sm:$0xff]
  %v36 = vld [vmem:[%s0 + $0xb0] sm:$0xff]
  %v37 = vld [vmem:[%s0 + $0xb8] sm:$0xff]
  %v38 = vld [vmem:[%s0 + $0xc0] sm:$0xff]
  %v39 = vld [vmem:[%s0 + $0xc8] sm:$0xff]
  %v40 = vld [vmem:[%s0 + $0xd0] sm:$0xff]
  %v41 = vld [vmem:[%s0 + $0xd8] sm:$0xff]
  %v42 = vld [vmem:[%s0 + $0xe0] sm:$0xff]
  %v43 = vld [vmem:[%s0 + $0xe8] sm:$0xff]
  %v44 = vld [vmem:[%s0 + $0xf0] sm:$0xff]
  %v45 = vld [vmem:[%s0 + $0xf8] sm:$0xff]
  %v46 = vld [vmem:[%s0 + $0x100] sm:$0xff]
  %v47 = vld [vmem:[%s0 + $0x108] sm:$0xff]
  %v48 = vld [vmem:[%s0 + $0x110] sm:$0xff]
  %v49 = vld [vmem:[%s0 + $0x118] sm:$0xff]
  %v50 = vld [vmem:[%s0 + $0x120] sm:$0xff]
  %v51 = vld [vmem:[%s0 + $0x128] sm:$0xff]
  %v52 = vld [vmem:[%s0 + $0x130] sm:$0xff]
  %v53 = vld [vmem:[%s0 + $0x138] sm:$0xff]
  %v54 = vld [vmem:[%s0 + $0x140] sm:$0xff]
  %v55 = vld [vmem:[%s0 + $0x148] sm:$0xff]
  %v56 = vld [vmem:[%s0 + $0x150] sm:$0xff]
  %v57 = vld [vmem:[%s0 + $0x158] sm:$0xff]
  %v58 = vld [vmem:[%s0 + $0x160] sm:$0xff]
  %v59 = vld [vmem:[%s0 + $0x168] sm:$0xff]
  %v60 = vld [vmem:[%s0 + $0x170] sm:$0xff]
  %v61 = vld [vmem:[%s0 + $0x178] sm:$0xff]
  %v62 = vld [vmem:[%s0 + $0x180] sm:$0xff]
  %v63 = vld [vmem:[%s0 + $0x188] sm:$0xff]
  %v64 = vld [vmem:[%s0 + $0x190] sm:$0xff]
  %v65 = vld [vmem:[%s0 + $0x198] sm:$0xff]
  %v66 = vld [vmem:[%s0 + $0x1a0] sm:$0xff]
  %v67 = vld [vmem:[%s0 + $0x1a8] sm:$0xff]
  %v68 = vld [vmem:[%s0 + $0x1b0] sm:$0xff]
  %v69 = vld [vmem:[%s0 + $0x1b8] sm:$0xff]
  %v70 = vld [vmem:[%s0 + $0x1c0] sm:$0xff]
  %v71 = vld [vmem:[%s0 + $0x1c8] sm:$0xff]
  %v72 = vld [vmem:[%s0 + $0x1d0] sm:$0xff]
  %v73 = vld [vmem:[%s0 + $0x1d8] sm:$0xff]
  %v74 = vld [vmem:[%s0 + $0x1e0] sm:$0xff]
  %v75 = vld [vmem:[%s0 + $0x1e8] sm:$0xff]
  %v76 = vld [vmem:[%s0 + $0x1f0] sm:$0xff]
  %v77 = vld [vmem:[%s0 + $0x1f8] sm:$0xff]
  %v78 = vld [vmem:[%s0 + $0x200] sm:$0xff]
  %v79 = vld [vmem:[%s0 + $0x208] sm:$0xff]
  %v80 = vld [vmem:[%s0 + $0x210] sm:$0xff]
  %v81 = vld [vmem:[%s0 + $0x218] sm:$0xff]
  %v82 = vld [vmem:[%s0 + $0x220] sm:$0xff]
  %v83 = vld [vmem:[%s0 + $0x228] sm:$0xff]
  %v84 = vld [vmem:[%s0 + $0x230] sm:$0xff]
  %v85 = vld [vmem:[%s0 + $0x238] sm:$0xff]
  %v86 = vld [vmem:[%s0 + $0x240] sm:$0xff]
  %v87 = vld [vmem:[%s0 + $0x248] sm:$0xff]
  %v88 = vld [vmem:[%s0 + $0x250] sm:$0xff]
  %v89 = vld [vmem:[%s0 + $0x258] sm:$0xff]
  %v90 = vld [vmem:[%s0 + $0x260] sm:$0xff]
  %v91 = vld [vmem:[%s0 + $0x268] sm:$0xff]
  %v92 = vld [vmem:[%s0 + $0x270] sm:$0xff]
  %v93 = vld [vmem:[%s0 + $0x278] sm:$0xff]
  %v94 = vld [vmem:[%s0 + $0x280] sm:$0xff]
  %v95 = vld [vmem:[%s0 + $0x288] sm:$0xff]
  %v96 = vld [vmem:[%s0 + $0x290] sm:$0xff]
  %v97 = vld [vmem:[%s0 + $0x298] sm:$0xff]
  %v98 = vld [vmem:[%s0 + $0x2a0] sm:$0xff]
  %v99 = vld [vmem:[%s0 + $0x2a8] sm:$0xff]
  %v100 = vld [vmem:[%s0 + $0x2b0] sm:$0xff]
  %v101 = vld [vmem:[%s0 + $0x2b8] sm:$0xff]
  %v102 = vld [vmem:[%s0 + $0x2c0] sm:$0xff]
  %v103 = vld [vmem:[%s0 + $0x2c8] sm:$0xff]
  %v104 = vld [vmem:[%s0 + $0x2d0] sm:$0xff]
  %v105 = vld [vmem:[%s0 + $0x2d8] sm:$0xff]
  %v106 = vld [vmem:[%s0 + $0x2e0] sm:$0xff]
  %v107 = vld [vmem:[%s0 + $0x2e8] sm:$0xff]
  %v108 = vld [vmem:[%s0 + $0x2f0] sm:$0xff]
  %v109 = vld [vmem:[%s0 + $0x2f8] sm:$0xff]
  %v110 = vld [vmem:[%s0 + $0x300] sm:$0xff]
  %v111 = vld [vmem:[%s0 + $0x308] sm:$0xff]
  %v112 = vld [vmem:[%s0 + $0x310] sm:$0xff]
  %v113 = vld [vmem:[%s0 + $0x318] sm:$0xff]
  %v114 = vld [vmem:[%s0 + $0x320] sm:$0xff]
  %v115 = vld [vmem:[%s0 + $0x328] sm:$0xff]
  %v116 = vld [vmem:[%s0 + $0x330] sm:$0xff]
  %v117 = vld [vmem:[%s0 + $0x338] sm:$0xff]
  %v118 = vld [vmem:[%s0 + $0x340] sm:$0xff]
  %v119 = vld [vmem:[%s0 + $0x348] sm:$0xff]
  %v120 = vld [vmem:[%s0 + $0x350] sm:$0xff]
  %v121 = vld [vmem:[%s0 + $0x358] sm:$0xff]
  %v122 = vld [vmem:[%s0 + $0x360] sm:$0xff]
  %v123 = vld [vmem:[%s0 + $0x368] sm:$0xff]
  %v124 = vld [vmem:[%s0 + $0x370] sm:$0xff]
  %v125 = vld [vmem:[%s0 + $0x378] sm:$0xff]
  %v126 = vld [vmem:[%s0 + $0x380] sm:$0xff]
  %v127 = vld [vmem:[%s0 + $0x388] sm:$0xff]
  %v128 = vld [vmem:[%s0 + $0x390] sm:$0xff]
  %v129 = vld [vmem:[%s0 + $0x398] sm:$0xff]
  %v130 = vld [vmem:[%s0 + $0x3a0] sm:$0xff]
  %v131 = vld [vmem:[%s0 + $0x3a8] sm:$0xff]
  %v132 = vld [vmem:[%s0 + $0x3b0] sm:$0xff]
  %v133 = vld [vmem:[%s0 + $0x3b8] sm:$0xff]
  %v134 = vld [vmem:[%s0 + $0x3c0] sm:$0xff]
  %v135 = vld [vmem:[%s0 + $0x3c8] sm:$0xff]
  %v136 = vld [vmem:[%s0 + $0x3d0] sm:$0xff]
  %v137 = vld [vmem:[%s0 + $0x3d8] sm:$0xff]
  %v138 = vld [vmem:[%s0 + $0x3e0] sm:$0xff]
  %v139 = vld [vmem:[%s0 + $0x3e8] sm:$0xff]
  %v140 = vld [vmem:[%s0 + $0x3f0] sm:$0xff]
  %v141 = vld [vmem:[%s0 + $0x3f8] sm:$0xff]
  %v142 = vld [vmem:[%s0 + $0x400] sm:$0xff]
  %v143 = vld [vmem:[%s0 + $0x408] sm:$0xff]
  %v144 = vld [vmem:[%s0 + $0x410] sm:$0xff]
  %v145 = vld [vmem:[%s0 + $0x418] sm:$0xff]
  %v146 = vld [vmem:[%s0 + $0x420] sm:$0xff]
  %v147 = vld [vmem:[%s0 + $0x428] sm:$0xff]
  %v148 = vld [vmem:[%s0 + $0x430] sm:$0xff]
  %v149 = vld [vmem:[%s0 + $0x438] sm:$0xff]
  %v150 = vld [vmem:[%s0 + $0x440] sm:$0xff]
  %v151 = vld [vmem:[%s0 + $0x448] sm:$0xff]
  %v152 = vld [vmem:[%s0 + $0x450] sm:$0xff]
  %v153 = vld [vmem:[%s0 + $0x458] sm:$0xff]
  %v154 = vld [vmem:[%s0 + $0x460] sm:$0xff]
  %v155 = vld [vmem:[%s0 + $0x468] sm:$0xff]
  %v156 = vld [vmem:[%s0 + $0x470] sm:$0xff]
  %v157 = vld [vmem:[%s0 + $0x478] sm:$0xff]
  %v158 = vld [vmem:[%s0 + $0x480] sm:$0xff]
  %v159 = vld [vmem:[%s0 + $0x488] sm:$0xff]
  %v160 = vld [vmem:[%s0 + $0x490] sm:$0xff]
  %v161 = vld [vmem:[%s0 + $0x498] sm:$0xff]
  %v162 = vld [vmem:[%s0 + $0x4a0] sm:$0xff]
  %v163 = vld [vmem:[%s0 + $0x4a8] sm:$0xff]
  %v164 = vld [vmem:[%s0 + $0x4b0] sm:$0xff]
  %v165 = vld [vmem:[%s0 + $0x4b8] sm:$0xff]
  %v166 = vld [vmem:[%s0 + $0x4c0] sm:$0xff]
  %v167 = vld [vmem:[%s0 + $0x4c8] sm:$0xff]
  %v168 = vld [vmem:[%s0 + $0x4d0] sm:$0xff]
  %v169 = vld [vmem:[%s0 + $0x4d8] sm:$0xff]
  %v170 = vld [vmem:[%s0 + $0x4e0] sm:$0xff]
  %v171 = vld [vmem:[%s0 + $0x4e8] sm:$0xff]
  %v172 = vld [vmem:[%s0 + $0x4f0] sm:$0xff]
  %v173 = vld [vmem:[%s0 + $0x4f8] sm:$0xff]
  %v174 = vld [vmem:[%s0 + $0x500] sm:$0xff]
  %v175 = vld [vmem:[%s0 + $0x508] sm:$0xff]
  %v176 = vld [vmem:[%s0 + $0x510] sm:$0xff]
  %v177 = vld [vmem:[%s0 + $0x518] sm:$0xff]
  %v178 = vld [vmem:[%s0 + $0x520] sm:$0xff]
  %v179 = vld [vmem:[%s0 + $0x528] sm:$0xff]
  %v180 = vld [vmem:[%s0 + $0x530] sm:$0xff]
  %v181 = vld [vmem:[%s0 + $0x538] sm:$0xff]
  %v182 = vld [vmem:[%s0 + $0x540] sm:$0xff]
  %v183 = vld [vmem:[%s0 + $0x548] sm:$0xff]
  %v184 = vld [vmem:[%s0 + $0x550] sm:$0xff]
  %v185 = vld [vmem:[%s0 + $0x558] sm:$0xff]
  %v186 = vld [vmem:[%s0 + $0x560] sm:$0xff]
  %v187 = vld [vmem:[%s0 + $0x568] sm:$0xff]
  %v188 = vld [vmem:[%s0 + $0x570] sm:$0xff]
  %v189 = vld [vmem:[%s0 + $0x578] sm:$0xff]
  %v190 = vld [vmem:[%s0 + $0x580] sm:$0xff]
  %v191 = vld [vmem:[%s0 + $0x588] sm:$0xff]
  %v192 = vld [vmem:[%s0 + $0x590] sm:$0xff]
  %v193 = vld [vmem:[%s0 + $0x598] sm:$0xff]
  %v194 = vld [vmem:[%s0 + $0x5a0] sm:$0xff]
  %v195 = vld [vmem:[%s0 + $0x5a8] sm:$0xff]
  %v196 = vld [vmem:[%s0 + $0x5b0] sm:$0xff]
  %v197 = vld [vmem:[%s0 + $0x5b8] sm:$0xff]
  %v198 = vld [vmem:[%s0 + $0x5c0] sm:$0xff]
  %v199 = vld [vmem:[%s0 + $0x5c8] sm:$0xff]
  %v200 = vld [vmem:[%s0 + $0x5d0] sm:$0xff]
  %v201 = vld [vmem:[%s0 + $0x5d8] sm:$0xff]
  %v202 = vld [vmem:[%s0 + $0x5e0] sm:$0xff]
  %v203 = vld [vmem:[%s0 + $0x5e8] sm:$0xff]
  %v204 = vld [vmem:[%s0 + $0x5f0] sm:$0xff]
  %v205 = vld [vmem:[%s0 + $0x5f8] sm:$0xff]
  %v206 = vld [vmem:[%s0 + $0x600] sm:$0xff]
  %v207 = vld [vmem:[%s0 + $0x608] sm:$0xff]
  %v208 = vld [vmem:[%s0 + $0x610] sm:$0xff]
  %v209 = vld [vmem:[%s0 + $0x618] sm:$0xff]
  %v210 = vld [vmem:[%s1] sm:$0xff]
  %v211 = vld [vmem:[%s1 + $0x8] sm:$0xff]
  %v212 = vld [vmem:[%s1 + $0x10] sm:$0xff]
  %v213 = vld [vmem:[%s1 + $0x18] sm:$0xff]
  %v214 = vld [vmem:[%s1 + $0x20] sm:$0xff]
  %v215 = vld [vmem:[%s1 + $0x28] sm:$0xff]
  %v216 = vld [vmem:[%s1 + $0x30] sm:$0xff]
  %v217 = vld [vmem:[%s1 + $0x38] sm:$0xff]
  %v218 = vld [vmem:[%s1 + $0x40] sm:$0xff]
  %v219 = vld [vmem:[%s1 + $0x48] sm:$0xff]
  %v220 = vld [vmem:[%s1 + $0x50] sm:$0xff]
  %v221 = vld [vmem:[%s1 + $0x58] sm:$0xff]
  %v222 = vld [vmem:[%s1 + $0x60] sm:$0xff]
  %v223 = vld [vmem:[%s1 + $0x68] sm:$0xff]
  %v224 = vld [vmem:[%s1 + $0x70] sm:$0xff]
  %v225 = vld [vmem:[%s1 + $0x78] sm:$0xff]
  %v226 = vld [vmem:[%s2] sm:$0x1]
  %v228 = vlaneseq
  %v229 = vshrl.u32 %v228, 7
  %v230 = vsub.s32 0, %v229
  %v231 = vrot.slane %v226, %v230
  %233 = vmatprep.subr.mxu0 0.0
  %234 = vmatpush1.msra.mxu0 %v210
  %235 = vmatprep.subr.mxu0 0.0
  %236 = vmatpush1.msra.mxu0 %v211
  %237 = vmatprep.subr.mxu0 0.0
  %238 = vmatpush1.msra.mxu0 %v212
  %239 = vmatprep.subr.mxu0 0.0
  %240 = vmatpush1.msra.mxu0 %v213
  %241 = vmatprep.subr.mxu0 0.0
  %242 = vmatpush1.msra.mxu0 %v214
  %243 = vmatprep.subr.mxu0 0.0
  %244 = vmatpush1.msra.mxu0 %v215
  %245 = vmatprep.subr.mxu0 0.0
  %246 = vmatpush1.msra.mxu0 %v216
  %247 = vmatprep.subr.mxu0 0.0
  %248 = vmatpush1.msra.mxu0 %v217
  %249 = vmatprep.subr.mxu0 0.0
  %250 = vmatpush1.msra.mxu0 %v218
  %251 = vmatprep.subr.mxu0 0.0
  %252 = vmatpush1.msra.mxu0 %v219
  %253 = vmatprep.subr.mxu0 0.0
  %254 = vmatpush1.msra.mxu0 %v220
  %255 = vmatprep.subr.mxu0 0.0
  %256 = vmatpush1.msra.mxu0 %v221
  %257 = vmatprep.subr.mxu0 0.0
  %258 = vmatpush1.msra.mxu0 %v222
  %259 = vmatprep.subr.mxu0 0.0
  %260 = vmatpush1.msra.mxu0 %v223
  %261 = vmatprep.subr.mxu0 0.0
  %262 = vmatpush1.msra.mxu0 %v224
  %263 = vmatprep.subr.mxu0 0.0
  %264 = vmatpush1.msra.mxu0 %v225
  %265 = vmatprep.subr.mxu0 0.0
  %266 = vmatpush1.msra.mxu0 0.0
  %267 = vmatprep.subr.mxu0 0.0
  %268 = vmatpush1.msra.mxu0 0.0
  %269 = vmatprep.subr.mxu0 0.0
  %270 = vmatpush1.msra.mxu0 0.0
  %271 = vmatprep.subr.mxu0 0.0
  %272 = vmatpush1.msra.mxu0 0.0
  %273 = vmatprep.subr.mxu0 0.0
  %274 = vmatpush1.msra.mxu0 0.0
  %275 = vmatprep.subr.mxu0 0.0
  %276 = vmatpush1.msra.mxu0 0.0
  %277 = vmatprep.subr.mxu0 0.0
  %278 = vmatpush1.msra.mxu0 0.0
  %279 = vmatprep.subr.mxu0 0.0
  %280 = vmatpush1.msra.mxu0 0.0
  %281 = vmatprep.subr.mxu0 0.0
  %282 = vmatpush1.msra.mxu0 0.0
  %283 = vmatprep.subr.mxu0 0.0
  %284 = vmatpush1.msra.mxu0 0.0
  %285 = vmatprep.subr.mxu0 0.0
  %286 = vmatpush1.msra.mxu0 0.0
  %287 = vmatprep.subr.mxu0 0.0
  %288 = vmatpush1.msra.mxu0 0.0
  %289 = vmatprep.subr.mxu0 0.0
  %290 = vmatpush1.msra.mxu0 0.0
  %291 = vmatprep.subr.mxu0 0.0
  %292 = vmatpush1.msra.mxu0 0.0
  %293 = vmatprep.subr.mxu0 0.0
  %294 = vmatpush1.msra.mxu0 0.0
  %295 = vmatprep.subr.mxu0 0.0
  %296 = vmatpush1.msra.mxu0 0.0
  %297 = vmatprep.mubr.f32.mxu0 0.0
  %298 = vmatmul.mubr.f32.gmra.mrb[0].mxu0 %v14
  %v299 = vpop.f32.mrb[0].mxu0
  %v300 = vadd.f32 %v231, %v299
  %v301 = vpop.f32.mrb[0].mxu0
  %302 = vmatprep.mubr.f32.mxu0 0.0
  %303 = vmatmul.mubr.f32.gmra.mrb[0].mxu0 %v15
  %v304 = vpop.f32.mrb[0].mxu0
  %v305 = vadd.f32 %v231, %v304
  %v306 = vpop.f32.mrb[0].mxu0
  %307 = vmatprep.mubr.f32.mxu0 0.0
  %308 = vmatmul.mubr.f32.gmra.mrb[0].mxu0 %v16
  %v309 = vpop.f32.mrb[0].mxu0
  %v310 = vadd.f32 %v231, %v309
  %v311 = vpop.f32.mrb[0].mxu0
  %312 = vmatprep.mubr.f32.mxu0 0.0
  %313 = vmatmul.mubr.f32.gmra.mrb[0].mxu0 %v17
  %v314 = vpop.f32.mrb[0].mxu0
  %v315 = vadd.f32 %v231, %v314
  %v316 = vpop.f32.mrb[0].mxu0
  %317 = vmatprep.mubr.f32.mxu0 0.0
  %318 = vmatmul.mubr.f32.gmra.mrb[0].mxu0 %v18
  %v319 = vpop.f32.mrb[0].mxu0
  %v320 = vadd.f32 %v231, %v319
  %v321 = vpop.f32.mrb[0].mxu0
  %322 = vmatprep.mubr.f32.mxu0 0.0
  %323 = vmatmul.mubr.f32.gmra.mrb[0].mxu0 %v19
  %v324 = vpop.f32.mrb[0].mxu0
  %v325 = vadd.f32 %v231, %v324
  %v326 = vpop.f32.mrb[0].mxu0
  %327 = vmatprep.mubr.f32.mxu0 0.0
  %328 = vmatmul.mubr.f32.gmra.mrb[0].mxu0 %v20
  %v329 = vpop.f32.mrb[0].mxu0
  %v330 = vadd.f32 %v231, %v329
  %v331 = vpop.f32.mrb[0].mxu0
  %332 = vmatprep.mubr.f32.mxu0 0.0
  %333 = vmatmul.mubr.f32.gmra.mrb[0].mxu0 %v21
  %v334 = vpop.f32.mrb[0].mxu0
  %v335 = vadd.f32 %v231, %v334
  %v336 = vpop.f32.mrb[0].mxu0
  %337 = vmatprep.mubr.f32.mxu0 0.0
  %338 = vmatmul.mubr.f32.gmra.mrb[0].mxu0 %v22
  %v339 = vpop.f32.mrb[0].mxu0
  %v340 = vadd.f32 %v231, %v339
  %v341 = vpop.f32.mrb[0].mxu0
  %342 = vmatprep.mubr.f32.mxu0 0.0
  %343 = vmatmul.mubr.f32.gmra.mrb[0].mxu0 %v23
  %v344 = vpop.f32.mrb[0].mxu0
  %v345 = vadd.f32 %v231, %v344
  %v346 = vpop.f32.mrb[0].mxu0
  %347 = vmatprep.mubr.f32.mxu0 0.0
  %348 = vmatmul.mubr.f32.gmra.mrb[0].mxu0 %v24
  %v349 = vpop.f32.mrb[0].mxu0
  %v350 = vadd.f32 %v231, %v349
  %v351 = vpop.f32.mrb[0].mxu0
  %352 = vmatprep.mubr.f32.mxu0 0.0
  %353 = vmatmul.mubr.f32.gmra.mrb[0].mxu0 %v25
  %v354 = vpop.f32.mrb[0].mxu0
  %v355 = vadd.f32 %v231, %v354
  %v356 = vpop.f32.mrb[0].mxu0
  %357 = vmatprep.mubr.f32.mxu0 0.0
  %358 = vmatmul.mubr.f32.gmra.mrb[0].mxu0 %v26
  %v359 = vpop.f32.mrb[0].mxu0
  %v360 = vadd.f32 %v231, %v359
  %v361 = vpop.f32.mrb[0].mxu0
  %362 = vmatprep.mubr.f32.mxu0 0.0
  %363 = vmatmul.mubr.f32.gmra.mrb[0].mxu0 %v27
  %v364 = vpop.f32.mrb[0].mxu0
  %v365 = vadd.f32 %v231, %v364
  %v366 = vpop.f32.mrb[0].mxu0
  %367 = vmatprep.mubr.f32.mxu0 0.0
  %368 = vmatmul.mubr.f32.gmra.mrb[0].mxu0 %v28
  %v369 = vpop.f32.mrb[0].mxu0
  %v370 = vadd.f32 %v231, %v369
  %v371 = vpop.f32.mrb[0].mxu0
  %372 = vmatprep.mubr.f32.mxu0 0.0
  %373 = vmatmul.mubr.f32.gmra.mrb[0].mxu0 %v29
  %v374 = vpop.f32.mrb[0].mxu0
  %v375 = vadd.f32 %v231, %v374
  %v376 = vpop.f32.mrb[0].mxu0
  %377 = vmatprep.mubr.f32.mxu0 0.0
  %378 = vmatmul.mubr.f32.gmra.mrb[0].mxu0 %v30
  %v379 = vpop.f32.mrb[0].mxu0
  %v380 = vadd.f32 %v231, %v379
  %v381 = vpop.f32.mrb[0].mxu0
  %382 = vmatprep.mubr.f32.mxu0 0.0
  %383 = vmatmul.mubr.f32.gmra.mrb[0].mxu0 %v31
  %v384 = vpop.f32.mrb[0].mxu0
  %v385 = vadd.f32 %v231, %v384
  %v386 = vpop.f32.mrb[0].mxu0
  %387 = vmatprep.mubr.f32.mxu0 0.0
  %388 = vmatmul.mubr.f32.gmra.mrb[0].mxu0 %v32
  %v389 = vpop.f32.mrb[0].mxu0
  %v390 = vadd.f32 %v231, %v389
  %v391 = vpop.f32.mrb[0].mxu0
  %392 = vmatprep.mubr.f32.mxu0 0.0
  %393 = vmatmul.mubr.f32.gmra.mrb[0].mxu0 %v33
  %v394 = vpop.f32.mrb[0].mxu0
  %v395 = vadd.f32 %v231, %v394
  %v396 = vpop.f32.mrb[0].mxu0
  %397 = vmatprep.mubr.f32.mxu0 0.0
  %398 = vmatmul.mubr.f32.gmra.mrb[0].mxu0 %v34
  %v399 = vpop.f32.mrb[0].mxu0
  %v400 = vadd.f32 %v231, %v399
  %v401 = vpop.f32.mrb[0].mxu0
  %402 = vmatprep.mubr.f32.mxu0 0.0
  %403 = vmatmul.mubr.f32.gmra.mrb[0].mxu0 %v35
  %v404 = vpop.f32.mrb[0].mxu0
  %v405 = vadd.f32 %v231, %v404
  %v406 = vpop.f32.mrb[0].mxu0
  %407 = vmatprep.mubr.f32.mxu0 0.0
  %408 = vmatmul.mubr.f32.gmra.mrb[0].mxu0 %v36
  %v409 = vpop.f32.mrb[0].mxu0
  %v410 = vadd.f32 %v231, %v409
  %v411 = vpop.f32.mrb[0].mxu0
  %412 = vmatprep.mubr.f32.mxu0 0.0
  %413 = vmatmul.mubr.f32.gmra.mrb[0].mxu0 %v37
  %v414 = vpop.f32.mrb[0].mxu0
  %v415 = vadd.f32 %v231, %v414
  %v416 = vpop.f32.mrb[0].mxu0
  %417 = vmatprep.mubr.f32.mxu0 0.0
  %418 = vmatmul.mubr.f32.gmra.mrb[0].mxu0 %v38
  %v419 = vpop.f32.mrb[0].mxu0
  %v420 = vadd.f32 %v231, %v419
  %v421 = vpop.f32.mrb[0].mxu0
  %422 = vmatprep.mubr.f32.mxu0 0.0
  %423 = vmatmul.mubr.f32.gmra.mrb[0].mxu0 %v39
  %v424 = vpop.f32.mrb[0].mxu0
  %v425 = vadd.f32 %v231, %v424
  %v426 = vpop.f32.mrb[0].mxu0
  %427 = vmatprep.mubr.f32.mxu0 0.0
  %428 = vmatmul.mubr.f32.gmra.mrb[0].mxu0 %v40
  %v429 = vpop.f32.mrb[0].mxu0
  %v430 = vadd.f32 %v231, %v429
  %v431 = vpop.f32.mrb[0].mxu0
  %432 = vmatprep.mubr.f32.mxu0 0.0
  %433 = vmatmul.mubr.f32.gmra.mrb[0].mxu0 %v41
  %v434 = vpop.f32.mrb[0].mxu0
  %v435 = vadd.f32 %v231, %v434
  %v436 = vpop.f32.mrb[0].mxu0
  %437 = vmatprep.mubr.f32.mxu0 0.0
  %438 = vmatmul.mubr.f32.gmra.mrb[0].mxu0 %v42
  %v439 = vpop.f32.mrb[0].mxu0
  %v440 = vadd.f32 %v231, %v439
  %v441 = vpop.f32.mrb[0].mxu0
  %442 = vmatprep.mubr.f32.mxu0 0.0
  %443 = vmatmul.mubr.f32.gmra.mrb[0].mxu0 %v43
  %v444 = vpop.f32.mrb[0].mxu0
  %v445 = vadd.f32 %v231, %v444
  %v446 = vpop.f32.mrb[0].mxu0
  %447 = vmatprep.mubr.f32.mxu0 0.0
  %448 = vmatmul.mubr.f32.gmra.mrb[0].mxu0 %v44
  %v449 = vpop.f32.mrb[0].mxu0
  %v450 = vadd.f32 %v231, %v449
  %v451 = vpop.f32.mrb[0].mxu0
  %452 = vmatprep.mubr.f32.mxu0 0.0
  %453 = vmatmul.mubr.f32.gmra.mrb[0].mxu0 %v45
  %v454 = vpop.f32.mrb[0].mxu0
  %v455 = vadd.f32 %v231, %v454
  %v456 = vpop.f32.mrb[0].mxu0
  %457 = vmatprep.mubr.f32.mxu0 0.0
  %458 = vmatmul.mubr.f32.gmra.mrb[0].mxu0 %v46
  %v459 = vpop.f32.mrb[0].mxu0
  %v460 = vadd.f32 %v231, %v459
  %v461 = vpop.f32.mrb[0].mxu0
  %462 = vmatprep.mubr.f32.mxu0 0.0
  %463 = vmatmul.mubr.f32.gmra.mrb[0].mxu0 %v47
  %v464 = vpop.f32.mrb[0].mxu0
  %v465 = vadd.f32 %v231, %v464
  %v466 = vpop.f32.mrb[0].mxu0
  %467 = vmatprep.mubr.f32.mxu0 0.0
  %468 = vmatmul.mubr.f32.gmra.mrb[0].mxu0 %v48
  %v469 = vpop.f32.mrb[0].mxu0
  %v470 = vadd.f32 %v231, %v469
  %v471 = vpop.f32.mrb[0].mxu0
  %472 = vmatprep.mubr.f32.mxu0 0.0
  %473 = vmatmul.mubr.f32.gmra.mrb[0].mxu0 %v49
  %v474 = vpop.f32.mrb[0].mxu0
  %v475 = vadd.f32 %v231, %v474
  %v476 = vpop.f32.mrb[0].mxu0
  %477 = vmatprep.mubr.f32.mxu0 0.0
  %478 = vmatmul.mubr.f32.gmra.mrb[0].mxu0 %v50
  %v479 = vpop.f32.mrb[0].mxu0
  %v480 = vadd.f32 %v231, %v479
  %v481 = vpop.f32.mrb[0].mxu0
  %482 = vmatprep.mubr.f32.mxu0 0.0
  %483 = vmatmul.mubr.f32.gmra.mrb[0].mxu0 %v51
  %v484 = vpop.f32.mrb[0].mxu0
  %v485 = vadd.f32 %v231, %v484
  %v486 = vpop.f32.mrb[0].mxu0
  %487 = vmatprep.mubr.f32.mxu0 0.0
  %488 = vmatmul.mubr.f32.gmra.mrb[0].mxu0 %v52
  %v489 = vpop.f32.mrb[0].mxu0
  %v490 = vadd.f32 %v231, %v489
  %v491 = vpop.f32.mrb[0].mxu0
  %492 = vmatprep.mubr.f32.mxu0 0.0
  %493 = vmatmul.mubr.f32.gmra.mrb[0].mxu0 %v53
  %v494 = vpop.f32.mrb[0].mxu0
  %v495 = vadd.f32 %v231, %v494
  %v496 = vpop.f32.mrb[0].mxu0
  %497 = vmatprep.mubr.f32.mxu0 0.0
  %498 = vmatmul.mubr.f32.gmra.mrb[0].mxu0 %v54
  %v499 = vpop.f32.mrb[0].mxu0
  %v500 = vadd.f32 %v231, %v499
  %v501 = vpop.f32.mrb[0].mxu0
  %502 = vmatprep.mubr.f32.mxu0 0.0
  %503 = vmatmul.mubr.f32.gmra.mrb[0].mxu0 %v55
  %v504 = vpop.f32.mrb[0].mxu0
  %v505 = vadd.f32 %v231, %v504
  %v506 = vpop.f32.mrb[0].mxu0
  %507 = vmatprep.mubr.f32.mxu0 0.0
  %508 = vmatmul.mubr.f32.gmra.mrb[0].mxu0 %v56
  %v509 = vpop.f32.mrb[0].mxu0
  %v510 = vadd.f32 %v231, %v509
  %v511 = vpop.f32.mrb[0].mxu0
  %512 = vmatprep.mubr.f32.mxu0 0.0
  %513 = vmatmul.mubr.f32.gmra.mrb[0].mxu0 %v57
  %v514 = vpop.f32.mrb[0].mxu0
  %v515 = vadd.f32 %v231, %v514
  %v516 = vpop.f32.mrb[0].mxu0
  %517 = vmatprep.mubr.f32.mxu0 0.0
  %518 = vmatmul.mubr.f32.gmra.mrb[0].mxu0 %v58
  %v519 = vpop.f32.mrb[0].mxu0
  %v520 = vadd.f32 %v231, %v519
  %v521 = vpop.f32.mrb[0].mxu0
  %522 = vmatprep.mubr.f32.mxu0 0.0
  %523 = vmatmul.mubr.f32.gmra.mrb[0].mxu0 %v59
  %v524 = vpop.f32.mrb[0].mxu0
  %v525 = vadd.f32 %v231, %v524
  %v526 = vpop.f32.mrb[0].mxu0
  %527 = vmatprep.mubr.f32.mxu0 0.0
  %528 = vmatmul.mubr.f32.gmra.mrb[0].mxu0 %v60
  %v529 = vpop.f32.mrb[0].mxu0
  %v530 = vadd.f32 %v231, %v529
  %v531 = vpop.f32.mrb[0].mxu0
  %532 = vmatprep.mubr.f32.mxu0 0.0
  %533 = vmatmul.mubr.f32.gmra.mrb[0].mxu0 %v61
  %v534 = vpop.f32.mrb[0].mxu0
  %v535 = vadd.f32 %v231, %v534
  %v536 = vpop.f32.mrb[0].mxu0
  %537 = vmatprep.mubr.f32.mxu0 0.0
  %538 = vmatmul.mubr.f32.gmra.mrb[0].mxu0 %v62
  %v539 = vpop.f32.mrb[0].mxu0
  %v540 = vadd.f32 %v231, %v539
  %v541 = vpop.f32.mrb[0].mxu0
  %542 = vmatprep.mubr.f32.mxu0 0.0
  %543 = vmatmul.mubr.f32.gmra.mrb[0].mxu0 %v63
  %v544 = vpop.f32.mrb[0].mxu0
  %v545 = vadd.f32 %v231, %v544
  %v546 = vpop.f32.mrb[0].mxu0
  %547 = vmatprep.mubr.f32.mxu0 0.0
  %548 = vmatmul.mubr.f32.gmra.mrb[0].mxu0 %v64
  %v549 = vpop.f32.mrb[0].mxu0
  %v550 = vadd.f32 %v231, %v549
  %v551 = vpop.f32.mrb[0].mxu0
  %552 = vmatprep.mubr.f32.mxu0 0.0
  %553 = vmatmul.mubr.f32.gmra.mrb[0].mxu0 %v65
  %v554 = vpop.f32.mrb[0].mxu0
  %v555 = vadd.f32 %v231, %v554
  %v556 = vpop.f32.mrb[0].mxu0
  %557 = vmatprep.mubr.f32.mxu0 0.0
  %558 = vmatmul.mubr.f32.gmra.mrb[0].mxu0 %v66
  %v559 = vpop.f32.mrb[0].mxu0
  %v560 = vadd.f32 %v231, %v559
  %v561 = vpop.f32.mrb[0].mxu0
  %562 = vmatprep.mubr.f32.mxu0 0.0
  %563 = vmatmul.mubr.f32.gmra.mrb[0].mxu0 %v67
  %v564 = vpop.f32.mrb[0].mxu0
  %v565 = vadd.f32 %v231, %v564
  %v566 = vpop.f32.mrb[0].mxu0
  %567 = vmatprep.mubr.f32.mxu0 0.0
  %568 = vmatmul.mubr.f32.gmra.mrb[0].mxu0 %v68
  %v569 = vpop.f32.mrb[0].mxu0
  %v570 = vadd.f32 %v231, %v569
  %v571 = vpop.f32.mrb[0].mxu0
  %572 = vmatprep.mubr.f32.mxu0 0.0
  %573 = vmatmul.mubr.f32.gmra.mrb[0].mxu0 %v69
  %v574 = vpop.f32.mrb[0].mxu0
  %v575 = vadd.f32 %v231, %v574
  %v576 = vpop.f32.mrb[0].mxu0
  %577 = vmatprep.mubr.f32.mxu0 0.0
  %578 = vmatmul.mubr.f32.gmra.mrb[0].mxu0 %v70
  %v579 = vpop.f32.mrb[0].mxu0
  %v580 = vadd.f32 %v231, %v579
  %v581 = vpop.f32.mrb[0].mxu0
  %582 = vmatprep.mubr.f32.mxu0 0.0
  %583 = vmatmul.mubr.f32.gmra.mrb[0].mxu0 %v71
  %v584 = vpop.f32.mrb[0].mxu0
  %v585 = vadd.f32 %v231, %v584
  %v586 = vpop.f32.mrb[0].mxu0
  %587 = vmatprep.mubr.f32.mxu0 0.0
  %588 = vmatmul.mubr.f32.gmra.mrb[0].mxu0 %v72
  %v589 = vpop.f32.mrb[0].mxu0
  %v590 = vadd.f32 %v231, %v589
  %v591 = vpop.f32.mrb[0].mxu0
  %592 = vmatprep.mubr.f32.mxu0 0.0
  %593 = vmatmul.mubr.f32.gmra.mrb[0].mxu0 %v73
  %v594 = vpop.f32.mrb[0].mxu0
  %v595 = vadd.f32 %v231, %v594
  %v596 = vpop.f32.mrb[0].mxu0
  %597 = vmatprep.mubr.f32.mxu0 0.0
  %598 = vmatmul.mubr.f32.gmra.mrb[0].mxu0 %v74
  %v599 = vpop.f32.mrb[0].mxu0
  %v600 = vadd.f32 %v231, %v599
  %v601 = vpop.f32.mrb[0].mxu0
  %602 = vmatprep.mubr.f32.mxu0 0.0
  %603 = vmatmul.mubr.f32.gmra.mrb[0].mxu0 %v75
  %v604 = vpop.f32.mrb[0].mxu0
  %v605 = vadd.f32 %v231, %v604
  %v606 = vpop.f32.mrb[0].mxu0
  %607 = vmatprep.mubr.f32.mxu0 0.0
  %608 = vmatmul.mubr.f32.gmra.mrb[0].mxu0 %v76
  %v609 = vpop.f32.mrb[0].mxu0
  %v610 = vadd.f32 %v231, %v609
  %v611 = vpop.f32.mrb[0].mxu0
  %612 = vmatprep.mubr.f32.mxu0 0.0
  %613 = vmatmul.mubr.f32.gmra.mrb[0].mxu0 %v77
  %v614 = vpop.f32.mrb[0].mxu0
  %v615 = vadd.f32 %v231, %v614
  %v616 = vpop.f32.mrb[0].mxu0
  %617 = vmatprep.mubr.f32.mxu0 0.0
  %618 = vmatmul.mubr.f32.gmra.mrb[0].mxu0 %v78
  %v619 = vpop.f32.mrb[0].mxu0
  %v620 = vadd.f32 %v231, %v619
  %v621 = vpop.f32.mrb[0].mxu0
  %622 = vmatprep.mubr.f32.mxu0 0.0
  %623 = vmatmul.mubr.f32.gmra.mrb[0].mxu0 %v79
  %v624 = vpop.f32.mrb[0].mxu0
  %v625 = vadd.f32 %v231, %v624
  %v626 = vpop.f32.mrb[0].mxu0
  %627 = vmatprep.mubr.f32.mxu0 0.0
  %628 = vmatmul.mubr.f32.gmra.mrb[0].mxu0 %v80
  %v629 = vpop.f32.mrb[0].mxu0
  %v630 = vadd.f32 %v231, %v629
  %v631 = vpop.f32.mrb[0].mxu0
  %632 = vmatprep.mubr.f32.mxu0 0.0
  %633 = vmatmul.mubr.f32.gmra.mrb[0].mxu0 %v81
  %v634 = vpop.f32.mrb[0].mxu0
  %v635 = vadd.f32 %v231, %v634
  %v636 = vpop.f32.mrb[0].mxu0
  %637 = vmatprep.mubr.f32.mxu0 0.0
  %638 = vmatmul.mubr.f32.gmra.mrb[0].mxu0 %v82
  %v639 = vpop.f32.mrb[0].mxu0
  %v640 = vadd.f32 %v231, %v639
  %v641 = vpop.f32.mrb[0].mxu0
  %642 = vmatprep.mubr.f32.mxu0 0.0
  %643 = vmatmul.mubr.f32.gmra.mrb[0].mxu0 %v83
  %v644 = vpop.f32.mrb[0].mxu0
  %v645 = vadd.f32 %v231, %v644
  %v646 = vpop.f32.mrb[0].mxu0
  %647 = vmatprep.mubr.f32.mxu0 0.0
  %648 = vmatmul.mubr.f32.gmra.mrb[0].mxu0 %v84
  %v649 = vpop.f32.mrb[0].mxu0
  %v650 = vadd.f32 %v231, %v649
  %v651 = vpop.f32.mrb[0].mxu0
  %652 = vmatprep.mubr.f32.mxu0 0.0
  %653 = vmatmul.mubr.f32.gmra.mrb[0].mxu0 %v85
  %v654 = vpop.f32.mrb[0].mxu0
  %v655 = vadd.f32 %v231, %v654
  %v656 = vpop.f32.mrb[0].mxu0
  %657 = vmatprep.mubr.f32.mxu0 0.0
  %658 = vmatmul.mubr.f32.gmra.mrb[0].mxu0 %v86
  %v659 = vpop.f32.mrb[0].mxu0
  %v660 = vadd.f32 %v231, %v659
  %v661 = vpop.f32.mrb[0].mxu0
  %662 = vmatprep.mubr.f32.mxu0 0.0
  %663 = vmatmul.mubr.f32.gmra.mrb[0].mxu0 %v87
  %v664 = vpop.f32.mrb[0].mxu0
  %v665 = vadd.f32 %v231, %v664
  %v666 = vpop.f32.mrb[0].mxu0
  %667 = vmatprep.mubr.f32.mxu0 0.0
  %668 = vmatmul.mubr.f32.gmra.mrb[0].mxu0 %v88
  %v669 = vpop.f32.mrb[0].mxu0
  %v670 = vadd.f32 %v231, %v669
  %v671 = vpop.f32.mrb[0].mxu0
  %672 = vmatprep.mubr.f32.mxu0 0.0
  %673 = vmatmul.mubr.f32.gmra.mrb[0].mxu0 %v89
  %v674 = vpop.f32.mrb[0].mxu0
  %v675 = vadd.f32 %v231, %v674
  %v676 = vpop.f32.mrb[0].mxu0
  %677 = vmatprep.mubr.f32.mxu0 0.0
  %678 = vmatmul.mubr.f32.gmra.mrb[0].mxu0 %v90
  %v679 = vpop.f32.mrb[0].mxu0
  %v680 = vadd.f32 %v231, %v679
  %v681 = vpop.f32.mrb[0].mxu0
  %682 = vmatprep.mubr.f32.mxu0 0.0
  %683 = vmatmul.mubr.f32.gmra.mrb[0].mxu0 %v91
  %v684 = vpop.f32.mrb[0].mxu0
  %v685 = vadd.f32 %v231, %v684
  %v686 = vpop.f32.mrb[0].mxu0
  %687 = vmatprep.mubr.f32.mxu0 0.0
  %688 = vmatmul.mubr.f32.gmra.mrb[0].mxu0 %v92
  %v689 = vpop.f32.mrb[0].mxu0
  %v690 = vadd.f32 %v231, %v689
  %v691 = vpop.f32.mrb[0].mxu0
  %692 = vmatprep.mubr.f32.mxu0 0.0
  %693 = vmatmul.mubr.f32.gmra.mrb[0].mxu0 %v93
  %v694 = vpop.f32.mrb[0].mxu0
  %v695 = vadd.f32 %v231, %v694
  %v696 = vpop.f32.mrb[0].mxu0
  %697 = vmatprep.mubr.f32.mxu0 0.0
  %698 = vmatmul.mubr.f32.gmra.mrb[0].mxu0 %v94
  %v699 = vpop.f32.mrb[0].mxu0
  %v700 = vadd.f32 %v231, %v699
  %v701 = vpop.f32.mrb[0].mxu0
  %702 = vmatprep.mubr.f32.mxu0 0.0
  %703 = vmatmul.mubr.f32.gmra.mrb[0].mxu0 %v95
  %v704 = vpop.f32.mrb[0].mxu0
  %v705 = vadd.f32 %v231, %v704
  %v706 = vpop.f32.mrb[0].mxu0
  %707 = vmatprep.mubr.f32.mxu0 0.0
  %708 = vmatmul.mubr.f32.gmra.mrb[0].mxu0 %v96
  %v709 = vpop.f32.mrb[0].mxu0
  %v710 = vadd.f32 %v231, %v709
  %v711 = vpop.f32.mrb[0].mxu0
  %712 = vmatprep.mubr.f32.mxu0 0.0
  %713 = vmatmul.mubr.f32.gmra.mrb[0].mxu0 %v97
  %v714 = vpop.f32.mrb[0].mxu0
  %v715 = vadd.f32 %v231, %v714
  %v716 = vpop.f32.mrb[0].mxu0
  %717 = vmatprep.mubr.f32.mxu0 0.0
  %718 = vmatmul.mubr.f32.gmra.mrb[0].mxu0 %v98
  %v719 = vpop.f32.mrb[0].mxu0
  %v720 = vadd.f32 %v231, %v719
  %v721 = vpop.f32.mrb[0].mxu0
  %722 = vmatprep.mubr.f32.mxu0 0.0
  %723 = vmatmul.mubr.f32.gmra.mrb[0].mxu0 %v99
  %v724 = vpop.f32.mrb[0].mxu0
  %v725 = vadd.f32 %v231, %v724
  %v726 = vpop.f32.mrb[0].mxu0
  %727 = vmatprep.mubr.f32.mxu0 0.0
  %728 = vmatmul.mubr.f32.gmra.mrb[0].mxu0 %v100
  %v729 = vpop.f32.mrb[0].mxu0
  %v730 = vadd.f32 %v231, %v729
  %v731 = vpop.f32.mrb[0].mxu0
  %732 = vmatprep.mubr.f32.mxu0 0.0
  %733 = vmatmul.mubr.f32.gmra.mrb[0].mxu0 %v101
  %v734 = vpop.f32.mrb[0].mxu0
  %v735 = vadd.f32 %v231, %v734
  %v736 = vpop.f32.mrb[0].mxu0
  %737 = vmatprep.mubr.f32.mxu0 0.0
  %738 = vmatmul.mubr.f32.gmra.mrb[0].mxu0 %v102
  %v739 = vpop.f32.mrb[0].mxu0
  %v740 = vadd.f32 %v231, %v739
  %v741 = vpop.f32.mrb[0].mxu0
  %742 = vmatprep.mubr.f32.mxu0 0.0
  %743 = vmatmul.mubr.f32.gmra.mrb[0].mxu0 %v103
  %v744 = vpop.f32.mrb[0].mxu0
  %v745 = vadd.f32 %v231, %v744
  %v746 = vpop.f32.mrb[0].mxu0
  %747 = vmatprep.mubr.f32.mxu0 0.0
  %748 = vmatmul.mubr.f32.gmra.mrb[0].mxu0 %v104
  %v749 = vpop.f32.mrb[0].mxu0
  %v750 = vadd.f32 %v231, %v749
  %v751 = vpop.f32.mrb[0].mxu0
  %752 = vmatprep.mubr.f32.mxu0 0.0
  %753 = vmatmul.mubr.f32.gmra.mrb[0].mxu0 %v105
  %v754 = vpop.f32.mrb[0].mxu0
  %v755 = vadd.f32 %v231, %v754
  %v756 = vpop.f32.mrb[0].mxu0
  %757 = vmatprep.mubr.f32.mxu0 0.0
  %758 = vmatmul.mubr.f32.gmra.mrb[0].mxu0 %v106
  %v759 = vpop.f32.mrb[0].mxu0
  %v760 = vadd.f32 %v231, %v759
  %v761 = vpop.f32.mrb[0].mxu0
  %762 = vmatprep.mubr.f32.mxu0 0.0
  %763 = vmatmul.mubr.f32.gmra.mrb[0].mxu0 %v107
  %v764 = vpop.f32.mrb[0].mxu0
  %v765 = vadd.f32 %v231, %v764
  %v766 = vpop.f32.mrb[0].mxu0
  %767 = vmatprep.mubr.f32.mxu0 0.0
  %768 = vmatmul.mubr.f32.gmra.mrb[0].mxu0 %v108
  %v769 = vpop.f32.mrb[0].mxu0
  %v770 = vadd.f32 %v231, %v769
  %v771 = vpop.f32.mrb[0].mxu0
  %772 = vmatprep.mubr.f32.mxu0 0.0
  %773 = vmatmul.mubr.f32.gmra.mrb[0].mxu0 %v109
  %v774 = vpop.f32.mrb[0].mxu0
  %v775 = vadd.f32 %v231, %v774
  %v776 = vpop.f32.mrb[0].mxu0
  %777 = vmatprep.mubr.f32.mxu0 0.0
  %778 = vmatmul.mubr.f32.gmra.mrb[0].mxu0 %v110
  %v779 = vpop.f32.mrb[0].mxu0
  %v780 = vadd.f32 %v231, %v779
  %v781 = vpop.f32.mrb[0].mxu0
  %782 = vmatprep.mubr.f32.mxu0 0.0
  %783 = vmatmul.mubr.f32.gmra.mrb[0].mxu0 %v111
  %v784 = vpop.f32.mrb[0].mxu0
  %v785 = vadd.f32 %v231, %v784
  %v786 = vpop.f32.mrb[0].mxu0
  %787 = vmatprep.mubr.f32.mxu0 0.0
  %788 = vmatmul.mubr.f32.gmra.mrb[0].mxu0 %v112
  %v789 = vpop.f32.mrb[0].mxu0
  %v790 = vadd.f32 %v231, %v789
  %v791 = vpop.f32.mrb[0].mxu0
  %792 = vmatprep.mubr.f32.mxu0 0.0
  %793 = vmatmul.mubr.f32.gmra.mrb[0].mxu0 %v113
  %v794 = vpop.f32.mrb[0].mxu0
  %v795 = vadd.f32 %v231, %v794
  %v796 = vpop.f32.mrb[0].mxu0
  %797 = vmatprep.mubr.f32.mxu0 0.0
  %798 = vmatmul.mubr.f32.gmra.mrb[0].mxu0 %v114
  %v799 = vpop.f32.mrb[0].mxu0
  %v800 = vadd.f32 %v231, %v799
  %v801 = vpop.f32.mrb[0].mxu0
  %802 = vmatprep.mubr.f32.mxu0 0.0
  %803 = vmatmul.mubr.f32.gmra.mrb[0].mxu0 %v115
  %v804 = vpop.f32.mrb[0].mxu0
  %v805 = vadd.f32 %v231, %v804
  %v806 = vpop.f32.mrb[0].mxu0
  %807 = vmatprep.mubr.f32.mxu0 0.0
  %808 = vmatmul.mubr.f32.gmra.mrb[0].mxu0 %v116
  %v809 = vpop.f32.mrb[0].mxu0
  %v810 = vadd.f32 %v231, %v809
  %v811 = vpop.f32.mrb[0].mxu0
  %812 = vmatprep.mubr.f32.mxu0 0.0
  %813 = vmatmul.mubr.f32.gmra.mrb[0].mxu0 %v117
  %v814 = vpop.f32.mrb[0].mxu0
  %v815 = vadd.f32 %v231, %v814
  %v816 = vpop.f32.mrb[0].mxu0
  %817 = vmatprep.mubr.f32.mxu0 0.0
  %818 = vmatmul.mubr.f32.gmra.mrb[0].mxu0 %v118
  %v819 = vpop.f32.mrb[0].mxu0
  %v820 = vadd.f32 %v231, %v819
  %v821 = vpop.f32.mrb[0].mxu0
  %822 = vmatprep.mubr.f32.mxu0 0.0
  %823 = vmatmul.mubr.f32.gmra.mrb[0].mxu0 %v119
  %v824 = vpop.f32.mrb[0].mxu0
  %v825 = vadd.f32 %v231, %v824
  %v826 = vpop.f32.mrb[0].mxu0
  %827 = vmatprep.mubr.f32.mxu0 0.0
  %828 = vmatmul.mubr.f32.gmra.mrb[0].mxu0 %v120
  %v829 = vpop.f32.mrb[0].mxu0
  %v830 = vadd.f32 %v231, %v829
  %v831 = vpop.f32.mrb[0].mxu0
  %832 = vmatprep.mubr.f32.mxu0 0.0
  %833 = vmatmul.mubr.f32.gmra.mrb[0].mxu0 %v121
  %v834 = vpop.f32.mrb[0].mxu0
  %v835 = vadd.f32 %v231, %v834
  %v836 = vpop.f32.mrb[0].mxu0
  %837 = vmatprep.mubr.f32.mxu0 0.0
  %838 = vmatmul.mubr.f32.gmra.mrb[0].mxu0 %v122
  %v839 = vpop.f32.mrb[0].mxu0
  %v840 = vadd.f32 %v231, %v839
  %v841 = vpop.f32.mrb[0].mxu0
  %842 = vmatprep.mubr.f32.mxu0 0.0
  %843 = vmatmul.mubr.f32.gmra.mrb[0].mxu0 %v123
  %v844 = vpop.f32.mrb[0].mxu0
  %v845 = vadd.f32 %v231, %v844
  %v846 = vpop.f32.mrb[0].mxu0
  %847 = vmatprep.mubr.f32.mxu0 0.0
  %848 = vmatmul.mubr.f32.gmra.mrb[0].mxu0 %v124
  %v849 = vpop.f32.mrb[0].mxu0
  %v850 = vadd.f32 %v231, %v849
  %v851 = vpop.f32.mrb[0].mxu0
  %852 = vmatprep.mubr.f32.mxu0 0.0
  %853 = vmatmul.mubr.f32.gmra.mrb[0].mxu0 %v125
  %v854 = vpop.f32.mrb[0].mxu0
  %v855 = vadd.f32 %v231, %v854
  %v856 = vpop.f32.mrb[0].mxu0
  %857 = vmatprep.mubr.f32.mxu0 0.0
  %858 = vmatmul.mubr.f32.gmra.mrb[0].mxu0 %v126
  %v859 = vpop.f32.mrb[0].mxu0
  %v860 = vadd.f32 %v231, %v859
  %v861 = vpop.f32.mrb[0].mxu0
  %862 = vmatprep.mubr.f32.mxu0 0.0
  %863 = vmatmul.mubr.f32.gmra.mrb[0].mxu0 %v127
  %v864 = vpop.f32.mrb[0].mxu0
  %v865 = vadd.f32 %v231, %v864
  %v866 = vpop.f32.mrb[0].mxu0
  %867 = vmatprep.mubr.f32.mxu0 0.0
  %868 = vmatmul.mubr.f32.gmra.mrb[0].mxu0 %v128
  %v869 = vpop.f32.mrb[0].mxu0
  %v870 = vadd.f32 %v231, %v869
  %v871 = vpop.f32.mrb[0].mxu0
  %872 = vmatprep.mubr.f32.mxu0 0.0
  %873 = vmatmul.mubr.f32.gmra.mrb[0].mxu0 %v129
  %v874 = vpop.f32.mrb[0].mxu0
  %v875 = vadd.f32 %v231, %v874
  %v876 = vpop.f32.mrb[0].mxu0
  %877 = vmatprep.mubr.f32.mxu0 0.0
  %878 = vmatmul.mubr.f32.gmra.mrb[0].mxu0 %v130
  %v879 = vpop.f32.mrb[0].mxu0
  %v880 = vadd.f32 %v231, %v879
  %v881 = vpop.f32.mrb[0].mxu0
  %882 = vmatprep.mubr.f32.mxu0 0.0
  %883 = vmatmul.mubr.f32.gmra.mrb[0].mxu0 %v131
  %v884 = vpop.f32.mrb[0].mxu0
  %v885 = vadd.f32 %v231, %v884
  %v886 = vpop.f32.mrb[0].mxu0
  %887 = vmatprep.mubr.f32.mxu0 0.0
  %888 = vmatmul.mubr.f32.gmra.mrb[0].mxu0 %v132
  %v889 = vpop.f32.mrb[0].mxu0
  %v890 = vadd.f32 %v231, %v889
  %v891 = vpop.f32.mrb[0].mxu0
  %892 = vmatprep.mubr.f32.mxu0 0.0
  %893 = vmatmul.mubr.f32.gmra.mrb[0].mxu0 %v133
  %v894 = vpop.f32.mrb[0].mxu0
  %v895 = vadd.f32 %v231, %v894
  %v896 = vpop.f32.mrb[0].mxu0
  %897 = vmatprep.mubr.f32.mxu0 0.0
  %898 = vmatmul.mubr.f32.gmra.mrb[0].mxu0 %v134
  %v899 = vpop.f32.mrb[0].mxu0
  %v900 = vadd.f32 %v231, %v899
  %v901 = vpop.f32.mrb[0].mxu0
  %902 = vmatprep.mubr.f32.mxu0 0.0
  %903 = vmatmul.mubr.f32.gmra.mrb[0].mxu0 %v135
  %v904 = vpop.f32.mrb[0].mxu0
  %v905 = vadd.f32 %v231, %v904
  %v906 = vpop.f32.mrb[0].mxu0
  %907 = vmatprep.mubr.f32.mxu0 0.0
  %908 = vmatmul.mubr.f32.gmra.mrb[0].mxu0 %v136
  %v909 = vpop.f32.mrb[0].mxu0
  %v910 = vadd.f32 %v231, %v909
  %v911 = vpop.f32.mrb[0].mxu0
  %912 = vmatprep.mubr.f32.mxu0 0.0
  %913 = vmatmul.mubr.f32.gmra.mrb[0].mxu0 %v137
  %v914 = vpop.f32.mrb[0].mxu0
  %v915 = vadd.f32 %v231, %v914
  %v916 = vpop.f32.mrb[0].mxu0
  %917 = vmatprep.mubr.f32.mxu0 0.0
  %918 = vmatmul.mubr.f32.gmra.mrb[0].mxu0 %v138
  %v919 = vpop.f32.mrb[0].mxu0
  %v920 = vadd.f32 %v231, %v919
  %v921 = vpop.f32.mrb[0].mxu0
  %922 = vmatprep.mubr.f32.mxu0 0.0
  %923 = vmatmul.mubr.f32.gmra.mrb[0].mxu0 %v139
  %v924 = vpop.f32.mrb[0].mxu0
  %v925 = vadd.f32 %v231, %v924
  %v926 = vpop.f32.mrb[0].mxu0
  %927 = vmatprep.mubr.f32.mxu0 0.0
  %928 = vmatmul.mubr.f32.gmra.mrb[0].mxu0 %v140
  %v929 = vpop.f32.mrb[0].mxu0
  %v930 = vadd.f32 %v231, %v929
  %v931 = vpop.f32.mrb[0].mxu0
  %932 = vmatprep.mubr.f32.mxu0 0.0
  %933 = vmatmul.mubr.f32.gmra.mrb[0].mxu0 %v141
  %v934 = vpop.f32.mrb[0].mxu0
  %v935 = vadd.f32 %v231, %v934
  %v936 = vpop.f32.mrb[0].mxu0
  %937 = vmatprep.mubr.f32.mxu0 0.0
  %938 = vmatmul.mubr.f32.gmra.mrb[0].mxu0 %v142
  %v939 = vpop.f32.mrb[0].mxu0
  %v940 = vadd.f32 %v231, %v939
  %v941 = vpop.f32.mrb[0].mxu0
  %942 = vmatprep.mubr.f32.mxu0 0.0
  %943 = vmatmul.mubr.f32.gmra.mrb[0].mxu0 %v143
  %v944 = vpop.f32.mrb[0].mxu0
  %v945 = vadd.f32 %v231, %v944
  %v946 = vpop.f32.mrb[0].mxu0
  %947 = vmatprep.mubr.f32.mxu0 0.0
  %948 = vmatmul.mubr.f32.gmra.mrb[0].mxu0 %v144
  %v949 = vpop.f32.mrb[0].mxu0
  %v950 = vadd.f32 %v231, %v949
  %v951 = vpop.f32.mrb[0].mxu0
  %952 = vmatprep.mubr.f32.mxu0 0.0
  %953 = vmatmul.mubr.f32.gmra.mrb[0].mxu0 %v145
  %v954 = vpop.f32.mrb[0].mxu0
  %v955 = vadd.f32 %v231, %v954
  %v956 = vpop.f32.mrb[0].mxu0
  %957 = vmatprep.mubr.f32.mxu0 0.0
  %958 = vmatmul.mubr.f32.gmra.mrb[0].mxu0 %v146
  %v959 = vpop.f32.mrb[0].mxu0
  %v960 = vadd.f32 %v231, %v959
  %v961 = vpop.f32.mrb[0].mxu0
  %962 = vmatprep.mubr.f32.mxu0 0.0
  %963 = vmatmul.mubr.f32.gmra.mrb[0].mxu0 %v147
  %v964 = vpop.f32.mrb[0].mxu0
  %v965 = vadd.f32 %v231, %v964
  %v966 = vpop.f32.mrb[0].mxu0
  %967 = vmatprep.mubr.f32.mxu0 0.0
  %968 = vmatmul.mubr.f32.gmra.mrb[0].mxu0 %v148
  %v969 = vpop.f32.mrb[0].mxu0
  %v970 = vadd.f32 %v231, %v969
  %v971 = vpop.f32.mrb[0].mxu0
  %972 = vmatprep.mubr.f32.mxu0 0.0
  %973 = vmatmul.mubr.f32.gmra.mrb[0].mxu0 %v149
  %v974 = vpop.f32.mrb[0].mxu0
  %v975 = vadd.f32 %v231, %v974
  %v976 = vpop.f32.mrb[0].mxu0
  %977 = vmatprep.mubr.f32.mxu0 0.0
  %978 = vmatmul.mubr.f32.gmra.mrb[0].mxu0 %v150
  %v979 = vpop.f32.mrb[0].mxu0
  %v980 = vadd.f32 %v231, %v979
  %v981 = vpop.f32.mrb[0].mxu0
  %982 = vmatprep.mubr.f32.mxu0 0.0
  %983 = vmatmul.mubr.f32.gmra.mrb[0].mxu0 %v151
  %v984 = vpop.f32.mrb[0].mxu0
  %v985 = vadd.f32 %v231, %v984
  %v986 = vpop.f32.mrb[0].mxu0
  %987 = vmatprep.mubr.f32.mxu0 0.0
  %988 = vmatmul.mubr.f32.gmra.mrb[0].mxu0 %v152
  %v989 = vpop.f32.mrb[0].mxu0
  %v990 = vadd.f32 %v231, %v989
  %v991 = vpop.f32.mrb[0].mxu0
  %992 = vmatprep.mubr.f32.mxu0 0.0
  %993 = vmatmul.mubr.f32.gmra.mrb[0].mxu0 %v153
  %v994 = vpop.f32.mrb[0].mxu0
  %v995 = vadd.f32 %v231, %v994
  %v996 = vpop.f32.mrb[0].mxu0
  %997 = vmatprep.mubr.f32.mxu0 0.0
  %998 = vmatmul.mubr.f32.gmra.mrb[0].mxu0 %v154
  %v999 = vpop.f32.mrb[0].mxu0
  %v1000 = vadd.f32 %v231, %v999
  %v1001 = vpop.f32.mrb[0].mxu0
  %1002 = vmatprep.mubr.f32.mxu0 0.0
  %1003 = vmatmul.mubr.f32.gmra.mrb[0].mxu0 %v155
  %v1004 = vpop.f32.mrb[0].mxu0
  %v1005 = vadd.f32 %v231, %v1004
  %v1006 = vpop.f32.mrb[0].mxu0
  %1007 = vmatprep.mubr.f32.mxu0 0.0
  %1008 = vmatmul.mubr.f32.gmra.mrb[0].mxu0 %v156
  %v1009 = vpop.f32.mrb[0].mxu0
  %v1010 = vadd.f32 %v231, %v1009
  %v1011 = vpop.f32.mrb[0].mxu0
  %1012 = vmatprep.mubr.f32.mxu0 0.0
  %1013 = vmatmul.mubr.f32.gmra.mrb[0].mxu0 %v157
  %v1014 = vpop.f32.mrb[0].mxu0
  %v1015 = vadd.f32 %v231, %v1014
  %v1016 = vpop.f32.mrb[0].mxu0
  %1017 = vmatprep.mubr.f32.mxu0 0.0
  %1018 = vmatmul.mubr.f32.gmra.mrb[0].mxu0 %v158
  %v1019 = vpop.f32.mrb[0].mxu0
  %v1020 = vadd.f32 %v231, %v1019
  %v1021 = vpop.f32.mrb[0].mxu0
  %1022 = vmatprep.mubr.f32.mxu0 0.0
  %1023 = vmatmul.mubr.f32.gmra.mrb[0].mxu0 %v159
  %v1024 = vpop.f32.mrb[0].mxu0
  %v1025 = vadd.f32 %v231, %v1024
  %v1026 = vpop.f32.mrb[0].mxu0
  %1027 = vmatprep.mubr.f32.mxu0 0.0
  %1028 = vmatmul.mubr.f32.gmra.mrb[0].mxu0 %v160
  %v1029 = vpop.f32.mrb[0].mxu0
  %v1030 = vadd.f32 %v231, %v1029
  %v1031 = vpop.f32.mrb[0].mxu0
  %1032 = vmatprep.mubr.f32.mxu0 0.0
  %1033 = vmatmul.mubr.f32.gmra.mrb[0].mxu0 %v161
  %v1034 = vpop.f32.mrb[0].mxu0
  %v1035 = vadd.f32 %v231, %v1034
  %v1036 = vpop.f32.mrb[0].mxu0
  %1037 = vmatprep.mubr.f32.mxu0 0.0
  %1038 = vmatmul.mubr.f32.gmra.mrb[0].mxu0 %v162
  %v1039 = vpop.f32.mrb[0].mxu0
  %v1040 = vadd.f32 %v231, %v1039
  %v1041 = vpop.f32.mrb[0].mxu0
  %1042 = vmatprep.mubr.f32.mxu0 0.0
  %1043 = vmatmul.mubr.f32.gmra.mrb[0].mxu0 %v163
  %v1044 = vpop.f32.mrb[0].mxu0
  %v1045 = vadd.f32 %v231, %v1044
  %v1046 = vpop.f32.mrb[0].mxu0
  %1047 = vmatprep.mubr.f32.mxu0 0.0
  %1048 = vmatmul.mubr.f32.gmra.mrb[0].mxu0 %v164
  %v1049 = vpop.f32.mrb[0].mxu0
  %v1050 = vadd.f32 %v231, %v1049
  %v1051 = vpop.f32.mrb[0].mxu0
  %1052 = vmatprep.mubr.f32.mxu0 0.0
  %1053 = vmatmul.mubr.f32.gmra.mrb[0].mxu0 %v165
  %v1054 = vpop.f32.mrb[0].mxu0
  %v1055 = vadd.f32 %v231, %v1054
  %v1056 = vpop.f32.mrb[0].mxu0
  %1057 = vmatprep.mubr.f32.mxu0 0.0
  %1058 = vmatmul.mubr.f32.gmra.mrb[0].mxu0 %v166
  %v1059 = vpop.f32.mrb[0].mxu0
  %v1060 = vadd.f32 %v231, %v1059
  %v1061 = vpop.f32.mrb[0].mxu0
  %1062 = vmatprep.mubr.f32.mxu0 0.0
  %1063 = vmatmul.mubr.f32.gmra.mrb[0].mxu0 %v167
  %v1064 = vpop.f32.mrb[0].mxu0
  %v1065 = vadd.f32 %v231, %v1064
  %v1066 = vpop.f32.mrb[0].mxu0
  %1067 = vmatprep.mubr.f32.mxu0 0.0
  %1068 = vmatmul.mubr.f32.gmra.mrb[0].mxu0 %v168
  %v1069 = vpop.f32.mrb[0].mxu0
  %v1070 = vadd.f32 %v231, %v1069
  %v1071 = vpop.f32.mrb[0].mxu0
  %1072 = vmatprep.mubr.f32.mxu0 0.0
  %1073 = vmatmul.mubr.f32.gmra.mrb[0].mxu0 %v169
  %v1074 = vpop.f32.mrb[0].mxu0
  %v1075 = vadd.f32 %v231, %v1074
  %v1076 = vpop.f32.mrb[0].mxu0
  %1077 = vmatprep.mubr.f32.mxu0 0.0
  %1078 = vmatmul.mubr.f32.gmra.mrb[0].mxu0 %v170
  %v1079 = vpop.f32.mrb[0].mxu0
  %v1080 = vadd.f32 %v231, %v1079
  %v1081 = vpop.f32.mrb[0].mxu0
  %1082 = vmatprep.mubr.f32.mxu0 0.0
  %1083 = vmatmul.mubr.f32.gmra.mrb[0].mxu0 %v171
  %v1084 = vpop.f32.mrb[0].mxu0
  %v1085 = vadd.f32 %v231, %v1084
  %v1086 = vpop.f32.mrb[0].mxu0
  %1087 = vmatprep.mubr.f32.mxu0 0.0
  %1088 = vmatmul.mubr.f32.gmra.mrb[0].mxu0 %v172
  %v1089 = vpop.f32.mrb[0].mxu0
  %v1090 = vadd.f32 %v231, %v1089
  %v1091 = vpop.f32.mrb[0].mxu0
  %1092 = vmatprep.mubr.f32.mxu0 0.0
  %1093 = vmatmul.mubr.f32.gmra.mrb[0].mxu0 %v173
  %v1094 = vpop.f32.mrb[0].mxu0
  %v1095 = vadd.f32 %v231, %v1094
  %v1096 = vpop.f32.mrb[0].mxu0
  %1097 = vmatprep.mubr.f32.mxu0 0.0
  %1098 = vmatmul.mubr.f32.gmra.mrb[0].mxu0 %v174
  %v1099 = vpop.f32.mrb[0].mxu0
  %v1100 = vadd.f32 %v231, %v1099
  %v1101 = vpop.f32.mrb[0].mxu0
  %1102 = vmatprep.mubr.f32.mxu0 0.0
  %1103 = vmatmul.mubr.f32.gmra.mrb[0].mxu0 %v175
  %v1104 = vpop.f32.mrb[0].mxu0
  %v1105 = vadd.f32 %v231, %v1104
  %v1106 = vpop.f32.mrb[0].mxu0
  %1107 = vmatprep.mubr.f32.mxu0 0.0
  %1108 = vmatmul.mubr.f32.gmra.mrb[0].mxu0 %v176
  %v1109 = vpop.f32.mrb[0].mxu0
  %v1110 = vadd.f32 %v231, %v1109
  %v1111 = vpop.f32.mrb[0].mxu0
  %1112 = vmatprep.mubr.f32.mxu0 0.0
  %1113 = vmatmul.mubr.f32.gmra.mrb[0].mxu0 %v177
  %v1114 = vpop.f32.mrb[0].mxu0
  %v1115 = vadd.f32 %v231, %v1114
  %v1116 = vpop.f32.mrb[0].mxu0
  %1117 = vmatprep.mubr.f32.mxu0 0.0
  %1118 = vmatmul.mubr.f32.gmra.mrb[0].mxu0 %v178
  %v1119 = vpop.f32.mrb[0].mxu0
  %v1120 = vadd.f32 %v231, %v1119
  %v1121 = vpop.f32.mrb[0].mxu0
  %1122 = vmatprep.mubr.f32.mxu0 0.0
  %1123 = vmatmul.mubr.f32.gmra.mrb[0].mxu0 %v179
  %v1124 = vpop.f32.mrb[0].mxu0
  %v1125 = vadd.f32 %v231, %v1124
  %v1126 = vpop.f32.mrb[0].mxu0
  %1127 = vmatprep.mubr.f32.mxu0 0.0
  %1128 = vmatmul.mubr.f32.gmra.mrb[0].mxu0 %v180
  %v1129 = vpop.f32.mrb[0].mxu0
  %v1130 = vadd.f32 %v231, %v1129
  %v1131 = vpop.f32.mrb[0].mxu0
  %1132 = vmatprep.mubr.f32.mxu0 0.0
  %1133 = vmatmul.mubr.f32.gmra.mrb[0].mxu0 %v181
  %v1134 = vpop.f32.mrb[0].mxu0
  %v1135 = vadd.f32 %v231, %v1134
  %v1136 = vpop.f32.mrb[0].mxu0
  %1137 = vmatprep.mubr.f32.mxu0 0.0
  %1138 = vmatmul.mubr.f32.gmra.mrb[0].mxu0 %v182
  %v1139 = vpop.f32.mrb[0].mxu0
  %v1140 = vadd.f32 %v231, %v1139
  %v1141 = vpop.f32.mrb[0].mxu0
  %1142 = vmatprep.mubr.f32.mxu0 0.0
  %1143 = vmatmul.mubr.f32.gmra.mrb[0].mxu0 %v183
  %v1144 = vpop.f32.mrb[0].mxu0
  %v1145 = vadd.f32 %v231, %v1144
  %v1146 = vpop.f32.mrb[0].mxu0
  %1147 = vmatprep.mubr.f32.mxu0 0.0
  %1148 = vmatmul.mubr.f32.gmra.mrb[0].mxu0 %v184
  %v1149 = vpop.f32.mrb[0].mxu0
  %v1150 = vadd.f32 %v231, %v1149
  %v1151 = vpop.f32.mrb[0].mxu0
  %1152 = vmatprep.mubr.f32.mxu0 0.0
  %1153 = vmatmul.mubr.f32.gmra.mrb[0].mxu0 %v185
  %v1154 = vpop.f32.mrb[0].mxu0
  %v1155 = vadd.f32 %v231, %v1154
  %v1156 = vpop.f32.mrb[0].mxu0
  %1157 = vmatprep.mubr.f32.mxu0 0.0
  %1158 = vmatmul.mubr.f32.gmra.mrb[0].mxu0 %v186
  %v1159 = vpop.f32.mrb[0].mxu0
  %v1160 = vadd.f32 %v231, %v1159
  %v1161 = vpop.f32.mrb[0].mxu0
  %1162 = vmatprep.mubr.f32.mxu0 0.0
  %1163 = vmatmul.mubr.f32.gmra.mrb[0].mxu0 %v187
  %v1164 = vpop.f32.mrb[0].mxu0
  %v1165 = vadd.f32 %v231, %v1164
  %v1166 = vpop.f32.mrb[0].mxu0
  %1167 = vmatprep.mubr.f32.mxu0 0.0
  %1168 = vmatmul.mubr.f32.gmra.mrb[0].mxu0 %v188
  %v1169 = vpop.f32.mrb[0].mxu0
  %v1170 = vadd.f32 %v231, %v1169
  %v1171 = vpop.f32.mrb[0].mxu0
  %1172 = vmatprep.mubr.f32.mxu0 0.0
  %1173 = vmatmul.mubr.f32.gmra.mrb[0].mxu0 %v189
  %v1174 = vpop.f32.mrb[0].mxu0
  %v1175 = vadd.f32 %v231, %v1174
  %v1176 = vpop.f32.mrb[0].mxu0
  %1177 = vmatprep.mubr.f32.mxu0 0.0
  %1178 = vmatmul.mubr.f32.gmra.mrb[0].mxu0 %v190
  %v1179 = vpop.f32.mrb[0].mxu0
  %v1180 = vadd.f32 %v231, %v1179
  %v1181 = vpop.f32.mrb[0].mxu0
  %1182 = vmatprep.mubr.f32.mxu0 0.0
  %1183 = vmatmul.mubr.f32.gmra.mrb[0].mxu0 %v191
  %v1184 = vpop.f32.mrb[0].mxu0
  %v1185 = vadd.f32 %v231, %v1184
  %v1186 = vpop.f32.mrb[0].mxu0
  %1187 = vmatprep.mubr.f32.mxu0 0.0
  %1188 = vmatmul.mubr.f32.gmra.mrb[0].mxu0 %v192
  %v1189 = vpop.f32.mrb[0].mxu0
  %v1190 = vadd.f32 %v231, %v1189
  %v1191 = vpop.f32.mrb[0].mxu0
  %1192 = vmatprep.mubr.f32.mxu0 0.0
  %1193 = vmatmul.mubr.f32.gmra.mrb[0].mxu0 %v193
  %v1194 = vpop.f32.mrb[0].mxu0
  %v1195 = vadd.f32 %v231, %v1194
  %v1196 = vpop.f32.mrb[0].mxu0
  %1197 = vmatprep.mubr.f32.mxu0 0.0
  %1198 = vmatmul.mubr.f32.gmra.mrb[0].mxu0 %v194
  %v1199 = vpop.f32.mrb[0].mxu0
  %v1200 = vadd.f32 %v231, %v1199
  %v1201 = vpop.f32.mrb[0].mxu0
  %1202 = vmatprep.mubr.f32.mxu0 0.0
  %1203 = vmatmul.mubr.f32.gmra.mrb[0].mxu0 %v195
  %v1204 = vpop.f32.mrb[0].mxu0
  %v1205 = vadd.f32 %v231, %v1204
  %v1206 = vpop.f32.mrb[0].mxu0
  %1207 = vmatprep.mubr.f32.mxu0 0.0
  %1208 = vmatmul.mubr.f32.gmra.mrb[0].mxu0 %v196
  %v1209 = vpop.f32.mrb[0].mxu0
  %v1210 = vadd.f32 %v231, %v1209
  %v1211 = vpop.f32.mrb[0].mxu0
  %1212 = vmatprep.mubr.f32.mxu0 0.0
  %1213 = vmatmul.mubr.f32.gmra.mrb[0].mxu0 %v197
  %v1214 = vpop.f32.mrb[0].mxu0
  %v1215 = vadd.f32 %v231, %v1214
  %v1216 = vpop.f32.mrb[0].mxu0
  %1217 = vmatprep.mubr.f32.mxu0 0.0
  %1218 = vmatmul.mubr.f32.gmra.mrb[0].mxu0 %v198
  %v1219 = vpop.f32.mrb[0].mxu0
  %v1220 = vadd.f32 %v231, %v1219
  %v1221 = vpop.f32.mrb[0].mxu0
  %1222 = vmatprep.mubr.f32.mxu0 0.0
  %1223 = vmatmul.mubr.f32.gmra.mrb[0].mxu0 %v199
  %v1224 = vpop.f32.mrb[0].mxu0
  %v1225 = vadd.f32 %v231, %v1224
  %v1226 = vpop.f32.mrb[0].mxu0
  %1227 = vmatprep.mubr.f32.mxu0 0.0
  %1228 = vmatmul.mubr.f32.gmra.mrb[0].mxu0 %v200
  %v1229 = vpop.f32.mrb[0].mxu0
  %v1230 = vadd.f32 %v231, %v1229
  %v1231 = vpop.f32.mrb[0].mxu0
  %1232 = vmatprep.mubr.f32.mxu0 0.0
  %1233 = vmatmul.mubr.f32.gmra.mrb[0].mxu0 %v201
  %v1234 = vpop.f32.mrb[0].mxu0
  %v1235 = vadd.f32 %v231, %v1234
  %v1236 = vpop.f32.mrb[0].mxu0
  %1237 = vmatprep.mubr.f32.mxu0 0.0
  %1238 = vmatmul.mubr.f32.gmra.mrb[0].mxu0 %v202
  %v1239 = vpop.f32.mrb[0].mxu0
  %v1240 = vadd.f32 %v231, %v1239
  %v1241 = vpop.f32.mrb[0].mxu0
  %1242 = vmatprep.mubr.f32.mxu0 0.0
  %1243 = vmatmul.mubr.f32.gmra.mrb[0].mxu0 %v203
  %v1244 = vpop.f32.mrb[0].mxu0
  %v1245 = vadd.f32 %v231, %v1244
  %v1246 = vpop.f32.mrb[0].mxu0
  %1247 = vmatprep.mubr.f32.mxu0 0.0
  %1248 = vmatmul.mubr.f32.gmra.mrb[0].mxu0 %v204
  %v1249 = vpop.f32.mrb[0].mxu0
  %v1250 = vadd.f32 %v231, %v1249
  %v1251 = vpop.f32.mrb[0].mxu0
  %1252 = vmatprep.mubr.f32.mxu0 0.0
  %1253 = vmatmul.mubr.f32.gmra.mrb[0].mxu0 %v205
  %v1254 = vpop.f32.mrb[0].mxu0
  %v1255 = vadd.f32 %v231, %v1254
  %v1256 = vpop.f32.mrb[0].mxu0
  %1257 = vmatprep.mubr.f32.mxu0 0.0
  %1258 = vmatmul.mubr.f32.gmra.mrb[0].mxu0 %v206
  %v1259 = vpop.f32.mrb[0].mxu0
  %v1260 = vadd.f32 %v231, %v1259
  %v1261 = vpop.f32.mrb[0].mxu0
  %1262 = vmatprep.mubr.f32.mxu0 0.0
  %1263 = vmatmul.mubr.f32.gmra.mrb[0].mxu0 %v207
  %v1264 = vpop.f32.mrb[0].mxu0
  %v1265 = vadd.f32 %v231, %v1264
  %v1266 = vpop.f32.mrb[0].mxu0
  %1267 = vmatprep.mubr.f32.mxu0 0.0
  %1268 = vmatmul.mubr.f32.gmra.mrb[0].mxu0 %v208
  %v1269 = vpop.f32.mrb[0].mxu0
  %v1270 = vadd.f32 %v231, %v1269
  %v1271 = vpop.f32.mrb[0].mxu0
  %1272 = vmatprep.mubr.f32.mxu0 0.0
  %1273 = vmatmul.mubr.f32.gmra.mrb[0].mxu0 %v209
  %v1274 = vpop.f32.mrb[0].mxu0
  %v1275 = vadd.f32 %v231, %v1274
  %v1276 = vpop.f32.mrb[0].mxu0
  %1277 = vdwg.mxu0
  %v1278 = vmax.f32 %v300, 0.0
  %v1279 = vmax.f32 %v305, 0.0
  %v1280 = vmax.f32 %v310, 0.0
  %v1281 = vmax.f32 %v315, 0.0
  %v1282 = vmax.f32 %v320, 0.0
  %v1283 = vmax.f32 %v325, 0.0
  %v1284 = vmax.f32 %v330, 0.0
  %v1285 = vmax.f32 %v335, 0.0
  %v1286 = vmax.f32 %v340, 0.0
  %v1287 = vmax.f32 %v345, 0.0
  %v1288 = vmax.f32 %v350, 0.0
  %v1289 = vmax.f32 %v355, 0.0
  %v1290 = vmax.f32 %v360, 0.0
  %v1291 = vmax.f32 %v365, 0.0
  %v1292 = vmax.f32 %v370, 0.0
  %v1293 = vmax.f32 %v375, 0.0
  %v1294 = vmax.f32 %v380, 0.0
  %v1295 = vmax.f32 %v385, 0.0
  %v1296 = vmax.f32 %v390, 0.0
  %v1297 = vmax.f32 %v395, 0.0
  %v1298 = vmax.f32 %v400, 0.0
  %v1299 = vmax.f32 %v405, 0.0
  %v1300 = vmax.f32 %v410, 0.0
  %v1301 = vmax.f32 %v415, 0.0
  %v1302 = vmax.f32 %v420, 0.0
  %v1303 = vmax.f32 %v425, 0.0
  %v1304 = vmax.f32 %v430, 0.0
  %v1305 = vmax.f32 %v435, 0.0
  %v1306 = vmax.f32 %v440, 0.0
  %v1307 = vmax.f32 %v445, 0.0
  %v1308 = vmax.f32 %v450, 0.0
  %v1309 = vmax.f32 %v455, 0.0
  %v1310 = vmax.f32 %v460, 0.0
  %v1311 = vmax.f32 %v465, 0.0
  %v1312 = vmax.f32 %v470, 0.0
  %v1313 = vmax.f32 %v475, 0.0
  %v1314 = vmax.f32 %v480, 0.0
  %v1315 = vmax.f32 %v485, 0.0
  %v1316 = vmax.f32 %v490, 0.0
  %v1317 = vmax.f32 %v495, 0.0
  %v1318 = vmax.f32 %v500, 0.0
  %v1319 = vmax.f32 %v505, 0.0
  %v1320 = vmax.f32 %v510, 0.0
  %v1321 = vmax.f32 %v515, 0.0
  %v1322 = vmax.f32 %v520, 0.0
  %v1323 = vmax.f32 %v525, 0.0
  %v1324 = vmax.f32 %v530, 0.0
  %v1325 = vmax.f32 %v535, 0.0
  %v1326 = vmax.f32 %v540, 0.0
  %v1327 = vmax.f32 %v545, 0.0
  %v1328 = vmax.f32 %v550, 0.0
  %v1329 = vmax.f32 %v555, 0.0
  %v1330 = vmax.f32 %v560, 0.0
  %v1331 = vmax.f32 %v565, 0.0
  %v1332 = vmax.f32 %v570, 0.0
  %v1333 = vmax.f32 %v575, 0.0
  %v1334 = vmax.f32 %v580, 0.0
  %v1335 = vmax.f32 %v585, 0.0
  %v1336 = vmax.f32 %v590, 0.0
  %v1337 = vmax.f32 %v595, 0.0
  %v1338 = vmax.f32 %v600, 0.0
  %v1339 = vmax.f32 %v605, 0.0
  %v1340 = vmax.f32 %v610, 0.0
  %v1341 = vmax.f32 %v615, 0.0
  %v1342 = vmax.f32 %v620, 0.0
  %v1343 = vmax.f32 %v625, 0.0
  %v1344 = vmax.f32 %v630, 0.0
  %v1345 = vmax.f32 %v635, 0.0
  %v1346 = vmax.f32 %v640, 0.0
  %v1347 = vmax.f32 %v645, 0.0
  %v1348 = vmax.f32 %v650, 0.0
  %v1349 = vmax.f32 %v655, 0.0
  %v1350 = vmax.f32 %v660, 0.0
  %v1351 = vmax.f32 %v665, 0.0
  %v1352 = vmax.f32 %v670, 0.0
  %v1353 = vmax.f32 %v675, 0.0
  %v1354 = vmax.f32 %v680, 0.0
  %v1355 = vmax.f32 %v685, 0.0
  %v1356 = vmax.f32 %v690, 0.0
  %v1357 = vmax.f32 %v695, 0.0
  %v1358 = vmax.f32 %v700, 0.0
  %v1359 = vmax.f32 %v705, 0.0
  %v1360 = vmax.f32 %v710, 0.0
  %v1361 = vmax.f32 %v715, 0.0
  %v1362 = vmax.f32 %v720, 0.0
  %v1363 = vmax.f32 %v725, 0.0
  %v1364 = vmax.f32 %v730, 0.0
  %v1365 = vmax.f32 %v735, 0.0
  %v1366 = vmax.f32 %v740, 0.0
  %v1367 = vmax.f32 %v745, 0.0
  %v1368 = vmax.f32 %v750, 0.0
  %v1369 = vmax.f32 %v755, 0.0
  %v1370 = vmax.f32 %v760, 0.0
  %v1371 = vmax.f32 %v765, 0.0
  %v1372 = vmax.f32 %v770, 0.0
  %v1373 = vmax.f32 %v775, 0.0
  %v1374 = vmax.f32 %v780, 0.0
  %v1375 = vmax.f32 %v785, 0.0
  %v1376 = vmax.f32 %v790, 0.0
  %v1377 = vmax.f32 %v795, 0.0
  %v1378 = vmax.f32 %v800, 0.0
  %v1379 = vmax.f32 %v805, 0.0
  %v1380 = vmax.f32 %v810, 0.0
  %v1381 = vmax.f32 %v815, 0.0
  %v1382 = vmax.f32 %v820, 0.0
  %v1383 = vmax.f32 %v825, 0.0
  %v1384 = vmax.f32 %v830, 0.0
  %v1385 = vmax.f32 %v835, 0.0
  %v1386 = vmax.f32 %v840, 0.0
  %v1387 = vmax.f32 %v845, 0.0
  %v1388 = vmax.f32 %v850, 0.0
  %v1389 = vmax.f32 %v855, 0.0
  %v1390 = vmax.f32 %v860, 0.0
  %v1391 = vmax.f32 %v865, 0.0
  %v1392 = vmax.f32 %v870, 0.0
  %v1393 = vmax.f32 %v875, 0.0
  %v1394 = vmax.f32 %v880, 0.0
  %v1395 = vmax.f32 %v885, 0.0
  %v1396 = vmax.f32 %v890, 0.0
  %v1397 = vmax.f32 %v895, 0.0
  %v1398 = vmax.f32 %v900, 0.0
  %v1399 = vmax.f32 %v905, 0.0
  %v1400 = vmax.f32 %v910, 0.0
  %v1401 = vmax.f32 %v915, 0.0
  %v1402 = vmax.f32 %v920, 0.0
  %v1403 = vmax.f32 %v925, 0.0
  %v1404 = vmax.f32 %v930, 0.0
  %v1405 = vmax.f32 %v935, 0.0
  %v1406 = vmax.f32 %v940, 0.0
  %v1407 = vmax.f32 %v945, 0.0
  %v1408 = vmax.f32 %v950, 0.0
  %v1409 = vmax.f32 %v955, 0.0
  %v1410 = vmax.f32 %v960, 0.0
  %v1411 = vmax.f32 %v965, 0.0
  %v1412 = vmax.f32 %v970, 0.0
  %v1413 = vmax.f32 %v975, 0.0
  %v1414 = vmax.f32 %v980, 0.0
  %v1415 = vmax.f32 %v985, 0.0
  %v1416 = vmax.f32 %v990, 0.0
  %v1417 = vmax.f32 %v995, 0.0
  %v1418 = vmax.f32 %v1000, 0.0
  %v1419 = vmax.f32 %v1005, 0.0
  %v1420 = vmax.f32 %v1010, 0.0
  %v1421 = vmax.f32 %v1015, 0.0
  %v1422 = vmax.f32 %v1020, 0.0
  %v1423 = vmax.f32 %v1025, 0.0
  %v1424 = vmax.f32 %v1030, 0.0
  %v1425 = vmax.f32 %v1035, 0.0
  %v1426 = vmax.f32 %v1040, 0.0
  %v1427 = vmax.f32 %v1045, 0.0
  %v1428 = vmax.f32 %v1050, 0.0
  %v1429 = vmax.f32 %v1055, 0.0
  %v1430 = vmax.f32 %v1060, 0.0
  %v1431 = vmax.f32 %v1065, 0.0
  %v1432 = vmax.f32 %v1070, 0.0
  %v1433 = vmax.f32 %v1075, 0.0
  %v1434 = vmax.f32 %v1080, 0.0
  %v1435 = vmax.f32 %v1085, 0.0
  %v1436 = vmax.f32 %v1090, 0.0
  %v1437 = vmax.f32 %v1095, 0.0
  %v1438 = vmax.f32 %v1100, 0.0
  %v1439 = vmax.f32 %v1105, 0.0
  %v1440 = vmax.f32 %v1110, 0.0
  %v1441 = vmax.f32 %v1115, 0.0
  %v1442 = vmax.f32 %v1120, 0.0
  %v1443 = vmax.f32 %v1125, 0.0
  %v1444 = vmax.f32 %v1130, 0.0
  %v1445 = vmax.f32 %v1135, 0.0
  %v1446 = vmax.f32 %v1140, 0.0
  %v1447 = vmax.f32 %v1145, 0.0
  %v1448 = vmax.f32 %v1150, 0.0
  %v1449 = vmax.f32 %v1155, 0.0
  %v1450 = vmax.f32 %v1160, 0.0
  %v1451 = vmax.f32 %v1165, 0.0
  %v1452 = vmax.f32 %v1170, 0.0
  %v1453 = vmax.f32 %v1175, 0.0
  %v1454 = vmax.f32 %v1180, 0.0
  %v1455 = vmax.f32 %v1185, 0.0
  %v1456 = vmax.f32 %v1190, 0.0
  %v1457 = vmax.f32 %v1195, 0.0
  %v1458 = vmax.f32 %v1200, 0.0
  %v1459 = vmax.f32 %v1205, 0.0
  %v1460 = vmax.f32 %v1210, 0.0
  %v1461 = vmax.f32 %v1215, 0.0
  %v1462 = vmax.f32 %v1220, 0.0
  %v1463 = vmax.f32 %v1225, 0.0
  %v1464 = vmax.f32 %v1230, 0.0
  %v1465 = vmax.f32 %v1235, 0.0
  %v1466 = vmax.f32 %v1240, 0.0
  %v1467 = vmax.f32 %v1245, 0.0
  %v1468 = vmax.f32 %v1250, 0.0
  %v1469 = vmax.f32 %v1255, 0.0
  %v1470 = vmax.f32 %v1260, 0.0
  %v1471 = vmax.f32 %v1265, 0.0
  %v1472 = vmax.f32 %v1270, 0.0
  %v1473 = vmax.f32 %v1275, 0.0
  %v1474 = vmax.f32 %v1278, %v1327
  %v1475 = vmax.f32 %v1279, %v1328
  %v1476 = vmax.f32 %v1280, %v1329
  %v1477 = vmax.f32 %v1281, %v1330
  %v1478 = vmax.f32 %v1282, %v1331
  %v1479 = vmax.f32 %v1283, %v1332
  %v1480 = vmax.f32 %v1284, %v1333
  %v1481 = vmax.f32 %v1285, %v1334
  %v1482 = vmax.f32 %v1286, %v1335
  %v1483 = vmax.f32 %v1287, %v1336
  %v1484 = vmax.f32 %v1288, %v1337
  %v1485 = vmax.f32 %v1289, %v1338
  %v1486 = vmax.f32 %v1290, %v1339
  %v1487 = vmax.f32 %v1291, %v1340
  %v1488 = vmax.f32 %v1292, %v1341
  %v1489 = vmax.f32 %v1293, %v1342
  %v1490 = vmax.f32 %v1294, %v1343
  %v1491 = vmax.f32 %v1295, %v1344
  %v1492 = vmax.f32 %v1296, %v1345
  %v1493 = vmax.f32 %v1297, %v1346
  %v1494 = vmax.f32 %v1298, %v1347
  %v1495 = vmax.f32 %v1299, %v1348
  %v1496 = vmax.f32 %v1300, %v1349
  %v1497 = vmax.f32 %v1301, %v1350
  %v1498 = vmax.f32 %v1302, %v1351
  %v1499 = vmax.f32 %v1303, %v1352
  %v1500 = vmax.f32 %v1304, %v1353
  %v1501 = vmax.f32 %v1305, %v1354
  %v1502 = vmax.f32 %v1306, %v1355
  %v1503 = vmax.f32 %v1307, %v1356
  %v1504 = vmax.f32 %v1308, %v1357
  %v1505 = vmax.f32 %v1309, %v1358
  %v1506 = vmax.f32 %v1310, %v1359
  %v1507 = vmax.f32 %v1311, %v1360
  %v1508 = vmax.f32 %v1312, %v1361
  %v1509 = vmax.f32 %v1313, %v1362
  %v1510 = vmax.f32 %v1314, %v1363
  %v1511 = vmax.f32 %v1315, %v1364
  %v1512 = vmax.f32 %v1316, %v1365
  %v1513 = vmax.f32 %v1317, %v1366
  %v1514 = vmax.f32 %v1318, %v1367
  %v1515 = vmax.f32 %v1319, %v1368
  %v1516 = vmax.f32 %v1320, %v1369
  %v1517 = vmax.f32 %v1321, %v1370
  %v1518 = vmax.f32 %v1322, %v1371
  %v1519 = vmax.f32 %v1323, %v1372
  %v1520 = vmax.f32 %v1324, %v1373
  %v1521 = vmax.f32 %v1325, %v1374
  %v1522 = vmax.f32 %v1326, %v1375
  %v1523 = vmax.f32 %v1474, %v1376
  %v1524 = vmax.f32 %v1475, %v1377
  %v1525 = vmax.f32 %v1476, %v1378
  %v1526 = vmax.f32 %v1477, %v1379
  %v1527 = vmax.f32 %v1478, %v1380
  %v1528 = vmax.f32 %v1479, %v1381
  %v1529 = vmax.f32 %v1480, %v1382
  %v1530 = vmax.f32 %v1481, %v1383
  %v1531 = vmax.f32 %v1482, %v1384
  %v1532 = vmax.f32 %v1483, %v1385
  %v1533 = vmax.f32 %v1484, %v1386
  %v1534 = vmax.f32 %v1485, %v1387
  %v1535 = vmax.f32 %v1486, %v1388
  %v1536 = vmax.f32 %v1487, %v1389
  %v1537 = vmax.f32 %v1488, %v1390
  %v1538 = vmax.f32 %v1489, %v1391
  %v1539 = vmax.f32 %v1490, %v1392
  %v1540 = vmax.f32 %v1491, %v1393
  %v1541 = vmax.f32 %v1492, %v1394
  %v1542 = vmax.f32 %v1493, %v1395
  %v1543 = vmax.f32 %v1494, %v1396
  %v1544 = vmax.f32 %v1495, %v1397
  %v1545 = vmax.f32 %v1496, %v1398
  %v1546 = vmax.f32 %v1497, %v1399
  %v1547 = vmax.f32 %v1498, %v1400
  %v1548 = vmax.f32 %v1499, %v1401
  %v1549 = vmax.f32 %v1500, %v1402
  %v1550 = vmax.f32 %v1501, %v1403
  %v1551 = vmax.f32 %v1502, %v1404
  %v1552 = vmax.f32 %v1503, %v1405
  %v1553 = vmax.f32 %v1504, %v1406
  %v1554 = vmax.f32 %v1505, %v1407
  %v1555 = vmax.f32 %v1506, %v1408
  %v1556 = vmax.f32 %v1507, %v1409
  %v1557 = vmax.f32 %v1508, %v1410
  %v1558 = vmax.f32 %v1509, %v1411
  %v1559 = vmax.f32 %v1510, %v1412
  %v1560 = vmax.f32 %v1511, %v1413
  %v1561 = vmax.f32 %v1512, %v1414
  %v1562 = vmax.f32 %v1513, %v1415
  %v1563 = vmax.f32 %v1514, %v1416
  %v1564 = vmax.f32 %v1515, %v1417
  %v1565 = vmax.f32 %v1516, %v1418
  %v1566 = vmax.f32 %v1517, %v1419
  %v1567 = vmax.f32 %v1518, %v1420
  %v1568 = vmax.f32 %v1519, %v1421
  %v1569 = vmax.f32 %v1520, %v1422
  %v1570 = vmax.f32 %v1521, %v1423
  %v1571 = vmax.f32 %v1522, %v1424
  %v1572 = vmax.f32 %v1523, %v1425
  %v1573 = vmax.f32 %v1524, %v1426
  %v1574 = vmax.f32 %v1525, %v1427
  %v1575 = vmax.f32 %v1526, %v1428
  %v1576 = vmax.f32 %v1527, %v1429
  %v1577 = vmax.f32 %v1528, %v1430
  %v1578 = vmax.f32 %v1529, %v1431
  %v1579 = vmax.f32 %v1530, %v1432
  %v1580 = vmax.f32 %v1531, %v1433
  %v1581 = vmax.f32 %v1532, %v1434
  %v1582 = vmax.f32 %v1533, %v1435
  %v1583 = vmax.f32 %v1534, %v1436
  %v1584 = vmax.f32 %v1535, %v1437
  %v1585 = vmax.f32 %v1536, %v1438
  %v1586 = vmax.f32 %v1537, %v1439
  %v1587 = vmax.f32 %v1538, %v1440
  %v1588 = vmax.f32 %v1539, %v1441
  %v1589 = vmax.f32 %v1540, %v1442
  %v1590 = vmax.f32 %v1541, %v1443
  %v1591 = vmax.f32 %v1542, %v1444
  %v1592 = vmax.f32 %v1543, %v1445
  %v1593 = vmax.f32 %v1544, %v1446
  %v1594 = vmax.f32 %v1545, %v1447
  %v1595 = vmax.f32 %v1546, %v1448
  %v1596 = vmax.f32 %v1547, %v1449
  %v1597 = vmax.f32 %v1548, %v1450
  %v1598 = vmax.f32 %v1549, %v1451
  %v1599 = vmax.f32 %v1550, %v1452
  %v1600 = vmax.f32 %v1551, %v1453
  %v1601 = vmax.f32 %v1552, %v1454
  %v1602 = vmax.f32 %v1553, %v1455
  %v1603 = vmax.f32 %v1554, %v1456
  %v1604 = vmax.f32 %v1555, %v1457
  %v1605 = vmax.f32 %v1556, %v1458
  %v1606 = vmax.f32 %v1557, %v1459
  %v1607 = vmax.f32 %v1558, %v1460
  %v1608 = vmax.f32 %v1559, %v1461
  %v1609 = vmax.f32 %v1560, %v1462
  %v1610 = vmax.f32 %v1561, %v1463
  %v1611 = vmax.f32 %v1562, %v1464
  %v1612 = vmax.f32 %v1563, %v1465
  %v1613 = vmax.f32 %v1564, %v1466
  %v1614 = vmax.f32 %v1565, %v1467
  %v1615 = vmax.f32 %v1566, %v1468
  %v1616 = vmax.f32 %v1567, %v1469
  %v1617 = vmax.f32 %v1568, %v1470
  %v1618 = vmax.f32 %v1569, %v1471
  %v1619 = vmax.f32 %v1570, %v1472
  %v1620 = vmax.f32 %v1571, %v1473
  %1621 = vst [vmem:[%s3] sm:$0xff] %v1572
  %1622 = vst [vmem:[%s3 + $0x8] sm:$0xff] %v1573
  %1623 = vst [vmem:[%s3 + $0x10] sm:$0xff] %v1574
  %1624 = vst [vmem:[%s3 + $0x18] sm:$0xff] %v1575
  %1625 = vst [vmem:[%s3 + $0x20] sm:$0xff] %v1576
  %1626 = vst [vmem:[%s3 + $0x28] sm:$0xff] %v1577
  %1627 = vst [vmem:[%s3 + $0x30] sm:$0xff] %v1578
  %1628 = vst [vmem:[%s3 + $0x38] sm:$0xff] %v1579
  %1629 = vst [vmem:[%s3 + $0x40] sm:$0xff] %v1580
  %1630 = vst [vmem:[%s3 + $0x48] sm:$0xff] %v1581
  %1631 = vst [vmem:[%s3 + $0x50] sm:$0xff] %v1582
  %1632 = vst [vmem:[%s3 + $0x58] sm:$0xff] %v1583
  %1633 = vst [vmem:[%s3 + $0x60] sm:$0xff] %v1584
  %1634 = vst [vmem:[%s3 + $0x68] sm:$0xff] %v1585
  %1635 = vst [vmem:[%s3 + $0x70] sm:$0xff] %v1586
  %1636 = vst [vmem:[%s3 + $0x78] sm:$0xff] %v1587
  %1637 = vst [vmem:[%s3 + $0x80] sm:$0xff] %v1588
  %1638 = vst [vmem:[%s3 + $0x88] sm:$0xff] %v1589
  %1639 = vst [vmem:[%s3 + $0x90] sm:$0xff] %v1590
  %1640 = vst [vmem:[%s3 + $0x98] sm:$0xff] %v1591
  %1641 = vst [vmem:[%s3 + $0xa0] sm:$0xff] %v1592
  %1642 = vst [vmem:[%s3 + $0xa8] sm:$0xff] %v1593
  %1643 = vst [vmem:[%s3 + $0xb0] sm:$0xff] %v1594
  %1644 = vst [vmem:[%s3 + $0xb8] sm:$0xff] %v1595
  %1645 = vst [vmem:[%s3 + $0xc0] sm:$0xff] %v1596
  %1646 = vst [vmem:[%s3 + $0xc8] sm:$0xff] %v1597
  %1647 = vst [vmem:[%s3 + $0xd0] sm:$0xff] %v1598
  %1648 = vst [vmem:[%s3 + $0xd8] sm:$0xff] %v1599
  %1649 = vst [vmem:[%s3 + $0xe0] sm:$0xff] %v1600
  %1650 = vst [vmem:[%s3 + $0xe8] sm:$0xff] %v1601
  %1651 = vst [vmem:[%s3 + $0xf0] sm:$0xff] %v1602
  %1652 = vst [vmem:[%s3 + $0xf8] sm:$0xff] %v1603
  %1653 = vst [vmem:[%s3 + $0x100] sm:$0xff] %v1604
  %1654 = vst [vmem:[%s3 + $0x108] sm:$0xff] %v1605
  %1655 = vst [vmem:[%s3 + $0x110] sm:$0xff] %v1606
  %1656 = vst [vmem:[%s3 + $0x118] sm:$0xff] %v1607
  %1657 = vst [vmem:[%s3 + $0x120] sm:$0xff] %v1608
  %1658 = vst [vmem:[%s3 + $0x128] sm:$0xff] %v1609
  %1659 = vst [vmem:[%s3 + $0x130] sm:$0xff] %v1610
  %1660 = vst [vmem:[%s3 + $0x138] sm:$0xff] %v1611
  %1661 = vst [vmem:[%s3 + $0x140] sm:$0xff] %v1612
  %1662 = vst [vmem:[%s3 + $0x148] sm:$0xff] %v1613
  %1663 = vst [vmem:[%s3 + $0x150] sm:$0xff] %v1614
  %1664 = vst [vmem:[%s3 + $0x158] sm:$0xff] %v1615
  %1665 = vst [vmem:[%s3 + $0x160] sm:$0xff] %v1616
  %1666 = vst [vmem:[%s3 + $0x168] sm:$0xff] %v1617
  %1667 = vst [vmem:[%s3 + $0x170] sm:$0xff] %v1618
  %1668 = vst [vmem:[%s3 + $0x178] sm:$0xff] %v1619
  %1669 = vst [vmem:[%s3 + $0x180] sm:$0xff] %v1620
  // Predicated region
  $region14: #{cnn_forward.3} parent=0 // pred_check
    _
  $region15: #{cnn_forward.3} parent=0 // pred_check_branch
    %1671 = sbr.rel (0) target = $region17
  $region16: #{cnn_forward.3} parent=0 // pred_region
    _
  $region17: #{cnn_forward.3} parent=0 // pred_fallthru
    _
  // Predicated region
  $region18: #{cnn_forward.3} parent=0 // pred_check
    _
  $region19: #{cnn_forward.3} parent=0 // pred_check_branch
    %1673 = sbr.rel (0) target = $region21
  $region20: #{cnn_forward.3} parent=0 // pred_region
    _
  $region21: #{cnn_forward.3} parent=0 // pred_fallthru
    _

// kernel: cnn_forward.4
$region0: #{cnn_forward.4}
  #allocation0 [shape = 'u32[]', space=smem, size = 0x4, offset = 0x4, fixed_abs, tag = 'smem constant byte address 0x4 - core index']
  #allocation1 [shape = 'u32[144,128]{1,0:T(1,128)}', space=vmem, size = 0x12000, scoped, tag = 'internal scratch']
  %s0 = inlined_call_operand.vmem [shape: f32[1,224,256], index: 0, kind: input, shape index: {}]
  %s1 = inlined_call_operand.vmem [shape: f32[256,128], index: 1, kind: input, shape index: {}]
  %s2 = inlined_call_operand.vmem [shape: f32[1,128], index: 2, kind: input, shape index: {}]
  %s3 = inlined_call_operand.vmem [shape: f32[56,128], index: 3, kind: output, shape index: {}]
  %s4 = sld [smem:[#allocation0]]
  $region22: #{cnn_forward.4} parent=0
    _
  %s6 = ssub.s32 1, %s4
  %s7 = scalar_select 0, %s6, %s4
  // Predicated region
  $region2: #{cnn_forward.4} parent=0 // pred_check
    _
  $region3: #{cnn_forward.4} parent=0 // pred_check_branch
    %9 = sbr.rel (0) target = $region5
  $region4: #{cnn_forward.4} parent=0 // pred_region
    _
  $region5: #{cnn_forward.4} parent=0 // pred_fallthru
    _
  // Predicated region
  $region6: #{cnn_forward.4} parent=0 // pred_check
    _
  $region7: #{cnn_forward.4} parent=0 // pred_check_branch
    %11 = sbr.rel (0) target = $region9
  $region8: #{cnn_forward.4} parent=0 // pred_region
    _
  $region9: #{cnn_forward.4} parent=0 // pred_fallthru
    _
  // Predicated region
  $region10: #{cnn_forward.4} parent=0 // pred_check
    _
  $region11: #{cnn_forward.4} parent=0 // pred_check_branch
    %13 = sbr.rel (0) target = $region13
  $region12: #{cnn_forward.4} parent=0 // pred_region
    _
  $region13: #{cnn_forward.4} parent=0 // pred_fallthru
    _
  %v14 = vld [vmem:[%s0] sm:$0xff]
  %v15 = vld [vmem:[%s0 + $0x8] sm:$0xff]
  %v16 = vld [vmem:[%s0 + $0x10] sm:$0xff]
  %v17 = vld [vmem:[%s0 + $0x18] sm:$0xff]
  %v18 = vld [vmem:[%s0 + $0x20] sm:$0xff]
  %v19 = vld [vmem:[%s0 + $0x28] sm:$0xff]
  %v20 = vld [vmem:[%s0 + $0x30] sm:$0xff]
  %v21 = vld [vmem:[%s0 + $0x38] sm:$0xff]
  %v22 = vld [vmem:[%s0 + $0x40] sm:$0xff]
  %v23 = vld [vmem:[%s0 + $0x48] sm:$0xff]
  %v24 = vld [vmem:[%s0 + $0x50] sm:$0xff]
  %v25 = vld [vmem:[%s0 + $0x58] sm:$0xff]
  %v26 = vld [vmem:[%s0 + $0x60] sm:$0xff]
  %v27 = vld [vmem:[%s0 + $0x68] sm:$0xff]
  %v28 = vld [vmem:[%s0 + $0x70] sm:$0xff]
  %v29 = vld [vmem:[%s0 + $0x78] sm:$0xff]
  %v30 = vld [vmem:[%s0 + $0x80] sm:$0xff]
  %v31 = vld [vmem:[%s0 + $0x88] sm:$0xff]
  %v32 = vld [vmem:[%s0 + $0x90] sm:$0xff]
  %v33 = vld [vmem:[%s0 + $0x98] sm:$0xff]
  %v34 = vld [vmem:[%s0 + $0xa0] sm:$0xff]
  %v35 = vld [vmem:[%s0 + $0xa8] sm:$0xff]
  %v36 = vld [vmem:[%s0 + $0xb0] sm:$0xff]
  %v37 = vld [vmem:[%s0 + $0xb8] sm:$0xff]
  %v38 = vld [vmem:[%s0 + $0xc0] sm:$0xff]
  %v39 = vld [vmem:[%s0 + $0xc8] sm:$0xff]
  %v40 = vld [vmem:[%s0 + $0xd0] sm:$0xff]
  %v41 = vld [vmem:[%s0 + $0xd8] sm:$0xff]
  %v42 = vld [vmem:[%s0 + $0xe0] sm:$0xff]
  %v43 = vld [vmem:[%s0 + $0xe8] sm:$0xff]
  %v44 = vld [vmem:[%s0 + $0xf0] sm:$0xff]
  %v45 = vld [vmem:[%s0 + $0xf8] sm:$0xff]
  %v46 = vld [vmem:[%s0 + $0x100] sm:$0xff]
  %v47 = vld [vmem:[%s0 + $0x108] sm:$0xff]
  %v48 = vld [vmem:[%s0 + $0x110] sm:$0xff]
  %v49 = vld [vmem:[%s0 + $0x118] sm:$0xff]
  %v50 = vld [vmem:[%s0 + $0x120] sm:$0xff]
  %v51 = vld [vmem:[%s0 + $0x128] sm:$0xff]
  %v52 = vld [vmem:[%s0 + $0x130] sm:$0xff]
  %v53 = vld [vmem:[%s0 + $0x138] sm:$0xff]
  %v54 = vld [vmem:[%s0 + $0x140] sm:$0xff]
  %v55 = vld [vmem:[%s0 + $0x148] sm:$0xff]
  %v56 = vld [vmem:[%s0 + $0x150] sm:$0xff]
  %v57 = vld [vmem:[%s0 + $0x158] sm:$0xff]
  %v58 = vld [vmem:[%s0 + $0x160] sm:$0xff]
  %v59 = vld [vmem:[%s0 + $0x168] sm:$0xff]
  %v60 = vld [vmem:[%s0 + $0x170] sm:$0xff]
  %v61 = vld [vmem:[%s0 + $0x178] sm:$0xff]
  %v62 = vld [vmem:[%s0 + $0x180] sm:$0xff]
  %v63 = vld [vmem:[%s0 + $0x188] sm:$0xff]
  %v64 = vld [vmem:[%s0 + $0x190] sm:$0xff]
  %v65 = vld [vmem:[%s0 + $0x198] sm:$0xff]
  %v66 = vld [vmem:[%s0 + $0x1a0] sm:$0xff]
  %v67 = vld [vmem:[%s0 + $0x1a8] sm:$0xff]
  %v68 = vld [vmem:[%s0 + $0x1b0] sm:$0xff]
  %v69 = vld [vmem:[%s0 + $0x1b8] sm:$0xff]
  %v70 = vld [vmem:[%s1] sm:$0xff]
  %v71 = vld [vmem:[%s1 + $0x8] sm:$0xff]
  %v72 = vld [vmem:[%s1 + $0x10] sm:$0xff]
  %v73 = vld [vmem:[%s1 + $0x18] sm:$0xff]
  %v74 = vld [vmem:[%s1 + $0x20] sm:$0xff]
  %v75 = vld [vmem:[%s1 + $0x28] sm:$0xff]
  %v76 = vld [vmem:[%s1 + $0x30] sm:$0xff]
  %v77 = vld [vmem:[%s1 + $0x38] sm:$0xff]
  %v78 = vld [vmem:[%s1 + $0x40] sm:$0xff]
  %v79 = vld [vmem:[%s1 + $0x48] sm:$0xff]
  %v80 = vld [vmem:[%s1 + $0x50] sm:$0xff]
  %v81 = vld [vmem:[%s1 + $0x58] sm:$0xff]
  %v82 = vld [vmem:[%s1 + $0x60] sm:$0xff]
  %v83 = vld [vmem:[%s1 + $0x68] sm:$0xff]
  %v84 = vld [vmem:[%s1 + $0x70] sm:$0xff]
  %v85 = vld [vmem:[%s1 + $0x78] sm:$0xff]
  %v86 = vld [vmem:[%s1 + $0x80] sm:$0xff]
  %v87 = vld [vmem:[%s1 + $0x88] sm:$0xff]
  %v88 = vld [vmem:[%s1 + $0x90] sm:$0xff]
  %v89 = vld [vmem:[%s1 + $0x98] sm:$0xff]
  %v90 = vld [vmem:[%s1 + $0xa0] sm:$0xff]
  %v91 = vld [vmem:[%s1 + $0xa8] sm:$0xff]
  %v92 = vld [vmem:[%s1 + $0xb0] sm:$0xff]
  %v93 = vld [vmem:[%s1 + $0xb8] sm:$0xff]
  %v94 = vld [vmem:[%s1 + $0xc0] sm:$0xff]
  %v95 = vld [vmem:[%s1 + $0xc8] sm:$0xff]
  %v96 = vld [vmem:[%s1 + $0xd0] sm:$0xff]
  %v97 = vld [vmem:[%s1 + $0xd8] sm:$0xff]
  %v98 = vld [vmem:[%s1 + $0xe0] sm:$0xff]
  %v99 = vld [vmem:[%s1 + $0xe8] sm:$0xff]
  %v100 = vld [vmem:[%s1 + $0xf0] sm:$0xff]
  %v101 = vld [vmem:[%s1 + $0xf8] sm:$0xff]
  %v102 = vld [vmem:[%s2] sm:$0x1]
  %v104 = vlaneseq
  %v105 = vshrl.u32 %v104, 7
  %v106 = vsub.s32 0, %v105
  %v107 = vrot.slane %v102, %v106
  %109 = vmatprep.subr.mxu0 0.0
  %110 = vmatpush1.msra.mxu0 %v70
  %111 = vmatprep.subr.mxu0 0.0
  %112 = vmatpush1.msra.mxu0 %v71
  %113 = vmatprep.subr.mxu0 0.0
  %114 = vmatpush1.msra.mxu0 %v72
  %115 = vmatprep.subr.mxu0 0.0
  %116 = vmatpush1.msra.mxu0 %v73
  %117 = vmatprep.subr.mxu0 0.0
  %118 = vmatpush1.msra.mxu0 %v74
  %119 = vmatprep.subr.mxu0 0.0
  %120 = vmatpush1.msra.mxu0 %v75
  %121 = vmatprep.subr.mxu0 0.0
  %122 = vmatpush1.msra.mxu0 %v76
  %123 = vmatprep.subr.mxu0 0.0
  %124 = vmatpush1.msra.mxu0 %v77
  %125 = vmatprep.subr.mxu0 0.0
  %126 = vmatpush1.msra.mxu0 %v78
  %127 = vmatprep.subr.mxu0 0.0
  %128 = vmatpush1.msra.mxu0 %v79
  %129 = vmatprep.subr.mxu0 0.0
  %130 = vmatpush1.msra.mxu0 %v80
  %131 = vmatprep.subr.mxu0 0.0
  %132 = vmatpush1.msra.mxu0 %v81
  %133 = vmatprep.subr.mxu0 0.0
  %134 = vmatpush1.msra.mxu0 %v82
  %135 = vmatprep.subr.mxu0 0.0
  %136 = vmatpush1.msra.mxu0 %v83
  %137 = vmatprep.subr.mxu0 0.0
  %138 = vmatpush1.msra.mxu0 %v84
  %139 = vmatprep.subr.mxu0 0.0
  %140 = vmatpush1.msra.mxu0 %v85
  %141 = vmatprep.subr.mxu0 0.0
  %142 = vmatpush1.msra.mxu0 %v86
  %143 = vmatprep.subr.mxu0 0.0
  %144 = vmatpush1.msra.mxu0 %v87
  %145 = vmatprep.subr.mxu0 0.0
  %146 = vmatpush1.msra.mxu0 %v88
  %147 = vmatprep.subr.mxu0 0.0
  %148 = vmatpush1.msra.mxu0 %v89
  %149 = vmatprep.subr.mxu0 0.0
  %150 = vmatpush1.msra.mxu0 %v90
  %151 = vmatprep.subr.mxu0 0.0
  %152 = vmatpush1.msra.mxu0 %v91
  %153 = vmatprep.subr.mxu0 0.0
  %154 = vmatpush1.msra.mxu0 %v92
  %155 = vmatprep.subr.mxu0 0.0
  %156 = vmatpush1.msra.mxu0 %v93
  %157 = vmatprep.subr.mxu0 0.0
  %158 = vmatpush1.msra.mxu0 %v94
  %159 = vmatprep.subr.mxu0 0.0
  %160 = vmatpush1.msra.mxu0 %v95
  %161 = vmatprep.subr.mxu0 0.0
  %162 = vmatpush1.msra.mxu0 %v96
  %163 = vmatprep.subr.mxu0 0.0
  %164 = vmatpush1.msra.mxu0 %v97
  %165 = vmatprep.subr.mxu0 0.0
  %166 = vmatpush1.msra.mxu0 %v98
  %167 = vmatprep.subr.mxu0 0.0
  %168 = vmatpush1.msra.mxu0 %v99
  %169 = vmatprep.subr.mxu0 0.0
  %170 = vmatpush1.msra.mxu0 %v100
  %171 = vmatprep.subr.mxu0 0.0
  %172 = vmatpush1.msra.mxu0 %v101
  %173 = vmatprep.mubr.f32.mxu0 %v15
  %174 = vmatmul.mubr.f32.gmra.mrb[0].mxu0 %v14
  %v175 = vpop.f32.mrb[0].mxu0
  %v176 = vadd.f32 %v107, %v175
  %v177 = vpop.f32.mrb[0].mxu0
  %178 = vmatprep.mubr.f32.mxu0 %v17
  %179 = vmatmul.mubr.f32.gmra.mrb[0].mxu0 %v16
  %v180 = vpop.f32.mrb[0].mxu0
  %v181 = vadd.f32 %v107, %v180
  %v182 = vpop.f32.mrb[0].mxu0
  %183 = vmatprep.mubr.f32.mxu0 %v19
  %184 = vmatmul.mubr.f32.gmra.mrb[0].mxu0 %v18
  %v185 = vpop.f32.mrb[0].mxu0
  %v186 = vadd.f32 %v107, %v185
  %v187 = vpop.f32.mrb[0].mxu0
  %188 = vmatprep.mubr.f32.mxu0 %v21
  %189 = vmatmul.mubr.f32.gmra.mrb[0].mxu0 %v20
  %v190 = vpop.f32.mrb[0].mxu0
  %v191 = vadd.f32 %v107, %v190
  %v192 = vpop.f32.mrb[0].mxu0
  %193 = vmatprep.mubr.f32.mxu0 %v23
  %194 = vmatmul.mubr.f32.gmra.mrb[0].mxu0 %v22
  %v195 = vpop.f32.mrb[0].mxu0
  %v196 = vadd.f32 %v107, %v195
  %v197 = vpop.f32.mrb[0].mxu0
  %198 = vmatprep.mubr.f32.mxu0 %v25
  %199 = vmatmul.mubr.f32.gmra.mrb[0].mxu0 %v24
  %v200 = vpop.f32.mrb[0].mxu0
  %v201 = vadd.f32 %v107, %v200
  %v202 = vpop.f32.mrb[0].mxu0
  %203 = vmatprep.mubr.f32.mxu0 %v27
  %204 = vmatmul.mubr.f32.gmra.mrb[0].mxu0 %v26
  %v205 = vpop.f32.mrb[0].mxu0
  %v206 = vadd.f32 %v107, %v205
  %v207 = vpop.f32.mrb[0].mxu0
  %208 = vmatprep.mubr.f32.mxu0 %v29
  %209 = vmatmul.mubr.f32.gmra.mrb[0].mxu0 %v28
  %v210 = vpop.f32.mrb[0].mxu0
  %v211 = vadd.f32 %v107, %v210
  %v212 = vpop.f32.mrb[0].mxu0
  %213 = vmatprep.mubr.f32.mxu0 %v31
  %214 = vmatmul.mubr.f32.gmra.mrb[0].mxu0 %v30
  %v215 = vpop.f32.mrb[0].mxu0
  %v216 = vadd.f32 %v107, %v215
  %v217 = vpop.f32.mrb[0].mxu0
  %218 = vmatprep.mubr.f32.mxu0 %v33
  %219 = vmatmul.mubr.f32.gmra.mrb[0].mxu0 %v32
  %v220 = vpop.f32.mrb[0].mxu0
  %v221 = vadd.f32 %v107, %v220
  %v222 = vpop.f32.mrb[0].mxu0
  %223 = vmatprep.mubr.f32.mxu0 %v35
  %224 = vmatmul.mubr.f32.gmra.mrb[0].mxu0 %v34
  %v225 = vpop.f32.mrb[0].mxu0
  %v226 = vadd.f32 %v107, %v225
  %v227 = vpop.f32.mrb[0].mxu0
  %228 = vmatprep.mubr.f32.mxu0 %v37
  %229 = vmatmul.mubr.f32.gmra.mrb[0].mxu0 %v36
  %v230 = vpop.f32.mrb[0].mxu0
  %v231 = vadd.f32 %v107, %v230
  %v232 = vpop.f32.mrb[0].mxu0
  %233 = vmatprep.mubr.f32.mxu0 %v39
  %234 = vmatmul.mubr.f32.gmra.mrb[0].mxu0 %v38
  %v235 = vpop.f32.mrb[0].mxu0
  %v236 = vadd.f32 %v107, %v235
  %v237 = vpop.f32.mrb[0].mxu0
  %238 = vmatprep.mubr.f32.mxu0 %v41
  %239 = vmatmul.mubr.f32.gmra.mrb[0].mxu0 %v40
  %v240 = vpop.f32.mrb[0].mxu0
  %v241 = vadd.f32 %v107, %v240
  %v242 = vpop.f32.mrb[0].mxu0
  %243 = vmatprep.mubr.f32.mxu0 %v43
  %244 = vmatmul.mubr.f32.gmra.mrb[0].mxu0 %v42
  %v245 = vpop.f32.mrb[0].mxu0
  %v246 = vadd.f32 %v107, %v245
  %v247 = vpop.f32.mrb[0].mxu0
  %248 = vmatprep.mubr.f32.mxu0 %v45
  %249 = vmatmul.mubr.f32.gmra.mrb[0].mxu0 %v44
  %v250 = vpop.f32.mrb[0].mxu0
  %v251 = vadd.f32 %v107, %v250
  %v252 = vpop.f32.mrb[0].mxu0
  %253 = vmatprep.mubr.f32.mxu0 %v47
  %254 = vmatmul.mubr.f32.gmra.mrb[0].mxu0 %v46
  %v255 = vpop.f32.mrb[0].mxu0
  %v256 = vadd.f32 %v107, %v255
  %v257 = vpop.f32.mrb[0].mxu0
  %258 = vmatprep.mubr.f32.mxu0 %v49
  %259 = vmatmul.mubr.f32.gmra.mrb[0].mxu0 %v48
  %v260 = vpop.f32.mrb[0].mxu0
  %v261 = vadd.f32 %v107, %v260
  %v262 = vpop.f32.mrb[0].mxu0
  %263 = vmatprep.mubr.f32.mxu0 %v51
  %264 = vmatmul.mubr.f32.gmra.mrb[0].mxu0 %v50
  %v265 = vpop.f32.mrb[0].mxu0
  %v266 = vadd.f32 %v107, %v265
  %v267 = vpop.f32.mrb[0].mxu0
  %268 = vmatprep.mubr.f32.mxu0 %v53
  %269 = vmatmul.mubr.f32.gmra.mrb[0].mxu0 %v52
  %v270 = vpop.f32.mrb[0].mxu0
  %v271 = vadd.f32 %v107, %v270
  %v272 = vpop.f32.mrb[0].mxu0
  %273 = vmatprep.mubr.f32.mxu0 %v55
  %274 = vmatmul.mubr.f32.gmra.mrb[0].mxu0 %v54
  %v275 = vpop.f32.mrb[0].mxu0
  %v276 = vadd.f32 %v107, %v275
  %v277 = vpop.f32.mrb[0].mxu0
  %278 = vmatprep.mubr.f32.mxu0 %v57
  %279 = vmatmul.mubr.f32.gmra.mrb[0].mxu0 %v56
  %v280 = vpop.f32.mrb[0].mxu0
  %v281 = vadd.f32 %v107, %v280
  %v282 = vpop.f32.mrb[0].mxu0
  %283 = vmatprep.mubr.f32.mxu0 %v59
  %284 = vmatmul.mubr.f32.gmra.mrb[0].mxu0 %v58
  %v285 = vpop.f32.mrb[0].mxu0
  %v286 = vadd.f32 %v107, %v285
  %v287 = vpop.f32.mrb[0].mxu0
  %288 = vmatprep.mubr.f32.mxu0 %v61
  %289 = vmatmul.mubr.f32.gmra.mrb[0].mxu0 %v60
  %v290 = vpop.f32.mrb[0].mxu0
  %v291 = vadd.f32 %v107, %v290
  %v292 = vpop.f32.mrb[0].mxu0
  %293 = vmatprep.mubr.f32.mxu0 %v63
  %294 = vmatmul.mubr.f32.gmra.mrb[0].mxu0 %v62
  %v295 = vpop.f32.mrb[0].mxu0
  %v296 = vadd.f32 %v107, %v295
  %v297 = vpop.f32.mrb[0].mxu0
  %298 = vmatprep.mubr.f32.mxu0 %v65
  %299 = vmatmul.mubr.f32.gmra.mrb[0].mxu0 %v64
  %v300 = vpop.f32.mrb[0].mxu0
  %v301 = vadd.f32 %v107, %v300
  %v302 = vpop.f32.mrb[0].mxu0
  %303 = vmatprep.mubr.f32.mxu0 %v67
  %304 = vmatmul.mubr.f32.gmra.mrb[0].mxu0 %v66
  %v305 = vpop.f32.mrb[0].mxu0
  %v306 = vadd.f32 %v107, %v305
  %v307 = vpop.f32.mrb[0].mxu0
  %308 = vmatprep.mubr.f32.mxu0 %v69
  %309 = vmatmul.mubr.f32.gmra.mrb[0].mxu0 %v68
  %v310 = vpop.f32.mrb[0].mxu0
  %v311 = vadd.f32 %v107, %v310
  %v312 = vpop.f32.mrb[0].mxu0
  %313 = vdwg.mxu0
  %v314 = vmax.f32 %v176, 0.0
  %v315 = vmax.f32 %v181, 0.0
  %v316 = vmax.f32 %v186, 0.0
  %v317 = vmax.f32 %v191, 0.0
  %v318 = vmax.f32 %v196, 0.0
  %v319 = vmax.f32 %v201, 0.0
  %v320 = vmax.f32 %v206, 0.0
  %v321 = vmax.f32 %v211, 0.0
  %v322 = vmax.f32 %v216, 0.0
  %v323 = vmax.f32 %v221, 0.0
  %v324 = vmax.f32 %v226, 0.0
  %v325 = vmax.f32 %v231, 0.0
  %v326 = vmax.f32 %v236, 0.0
  %v327 = vmax.f32 %v241, 0.0
  %v328 = vmax.f32 %v246, 0.0
  %v329 = vmax.f32 %v251, 0.0
  %v330 = vmax.f32 %v256, 0.0
  %v331 = vmax.f32 %v261, 0.0
  %v332 = vmax.f32 %v266, 0.0
  %v333 = vmax.f32 %v271, 0.0
  %v334 = vmax.f32 %v276, 0.0
  %v335 = vmax.f32 %v281, 0.0
  %v336 = vmax.f32 %v286, 0.0
  %v337 = vmax.f32 %v291, 0.0
  %v338 = vmax.f32 %v296, 0.0
  %v339 = vmax.f32 %v301, 0.0
  %v340 = vmax.f32 %v306, 0.0
  %v341 = vmax.f32 %v311, 0.0
  %v342 = vmax.f32 %v314, %v321
  %v343 = vmax.f32 %v315, %v322
  %v344 = vmax.f32 %v316, %v323
  %v345 = vmax.f32 %v317, %v324
  %v346 = vmax.f32 %v318, %v325
  %v347 = vmax.f32 %v319, %v326
  %v348 = vmax.f32 %v320, %v327
  %v349 = vmax.f32 %v342, %v328
  %v350 = vmax.f32 %v343, %v329
  %v351 = vmax.f32 %v344, %v330
  %v352 = vmax.f32 %v345, %v331
  %v353 = vmax.f32 %v346, %v332
  %v354 = vmax.f32 %v347, %v333
  %v355 = vmax.f32 %v348, %v334
  %v356 = vmax.f32 %v349, %v335
  %v357 = vmax.f32 %v350, %v336
  %v358 = vmax.f32 %v351, %v337
  %v359 = vmax.f32 %v352, %v338
  %v360 = vmax.f32 %v353, %v339
  %v361 = vmax.f32 %v354, %v340
  %v362 = vmax.f32 %v355, %v341
  %363 = vst [vmem:[%s3] sm:$0xff] %v356
  %364 = vst [vmem:[%s3 + $0x8] sm:$0xff] %v357
  %365 = vst [vmem:[%s3 + $0x10] sm:$0xff] %v358
  %366 = vst [vmem:[%s3 + $0x18] sm:$0xff] %v359
  %367 = vst [vmem:[%s3 + $0x20] sm:$0xff] %v360
  %368 = vst [vmem:[%s3 + $0x28] sm:$0xff] %v361
  %369 = vst [vmem:[%s3 + $0x30] sm:$0xff] %v362
  // Predicated region
  $region14: #{cnn_forward.4} parent=0 // pred_check
    _
  $region15: #{cnn_forward.4} parent=0 // pred_check_branch
    %371 = sbr.rel (0) target = $region17
  $region16: #{cnn_forward.4} parent=0 // pred_region
    _
  $region17: #{cnn_forward.4} parent=0 // pred_fallthru
    _
  // Predicated region
  $region18: #{cnn_forward.4} parent=0 // pred_check
    _
  $region19: #{cnn_forward.4} parent=0 // pred_check_branch
    %373 = sbr.rel (0) target = $region21
  $region20: #{cnn_forward.4} parent=0 // pred_region
    _
  $region21: #{cnn_forward.4} parent=0 // pred_fallthru
    _

// kernel: cnn_forward.5
$region0: #{cnn_forward.5}
  #allocation0 [shape = 'u32[]', space=smem, size = 0x4, offset = 0x4, fixed_abs, tag = 'smem constant byte address 0x4 - core index']
  #allocation1 [shape = 'u32[144,128]{1,0:T(1,128)}', space=vmem, size = 0x12000, scoped, tag = 'internal scratch']
  %s0 = inlined_call_operand.vmem [shape: f32[8,512], index: 0, kind: input, shape index: {}]
  %s1 = inlined_call_operand.vmem [shape: f32[512,128], index: 1, kind: input, shape index: {}]
  %s2 = inlined_call_operand.vmem [shape: f32[1,128], index: 2, kind: input, shape index: {}]
  %s3 = inlined_call_operand.vmem [shape: f32[128,128], index: 3, kind: input, shape index: {}]
  %s4 = inlined_call_operand.vmem [shape: f32[1,128], index: 4, kind: input, shape index: {}]
  %s5 = inlined_call_operand.vmem [shape: f32[128,128], index: 5, kind: input, shape index: {}]
  %s6 = inlined_call_operand.vmem [shape: f32[1,128], index: 6, kind: input, shape index: {}]
  %s7 = inlined_call_operand.vmem [shape: f32[8,128], index: 7, kind: output, shape index: {}]
  %s8 = sld [smem:[#allocation0]]
  $region38: #{cnn_forward.5} parent=0
    _
  %s10 = ssub.s32 1, %s8
  %s11 = scalar_select 0, %s10, %s8
  // Predicated region
  $region2: #{cnn_forward.5} parent=0 // pred_check
    _
  $region3: #{cnn_forward.5} parent=0 // pred_check_branch
    %13 = sbr.rel (0) target = $region5
  $region4: #{cnn_forward.5} parent=0 // pred_region
    _
  $region5: #{cnn_forward.5} parent=0 // pred_fallthru
    _
  // Predicated region
  $region6: #{cnn_forward.5} parent=0 // pred_check
    _
  $region7: #{cnn_forward.5} parent=0 // pred_check_branch
    %15 = sbr.rel (0) target = $region9
  $region8: #{cnn_forward.5} parent=0 // pred_region
    _
  $region9: #{cnn_forward.5} parent=0 // pred_fallthru
    _
  // Predicated region
  $region10: #{cnn_forward.5} parent=0 // pred_check
    _
  $region11: #{cnn_forward.5} parent=0 // pred_check_branch
    %17 = sbr.rel (0) target = $region13
  $region12: #{cnn_forward.5} parent=0 // pred_region
    _
  $region13: #{cnn_forward.5} parent=0 // pred_fallthru
    _
  // Predicated region
  $region14: #{cnn_forward.5} parent=0 // pred_check
    _
  $region15: #{cnn_forward.5} parent=0 // pred_check_branch
    %19 = sbr.rel (0) target = $region17
  $region16: #{cnn_forward.5} parent=0 // pred_region
    _
  $region17: #{cnn_forward.5} parent=0 // pred_fallthru
    _
  // Predicated region
  $region18: #{cnn_forward.5} parent=0 // pred_check
    _
  $region19: #{cnn_forward.5} parent=0 // pred_check_branch
    %21 = sbr.rel (0) target = $region21
  $region20: #{cnn_forward.5} parent=0 // pred_region
    _
  $region21: #{cnn_forward.5} parent=0 // pred_fallthru
    _
  // Predicated region
  $region22: #{cnn_forward.5} parent=0 // pred_check
    _
  $region23: #{cnn_forward.5} parent=0 // pred_check_branch
    %23 = sbr.rel (0) target = $region25
  $region24: #{cnn_forward.5} parent=0 // pred_region
    _
  $region25: #{cnn_forward.5} parent=0 // pred_fallthru
    _
  // Predicated region
  $region26: #{cnn_forward.5} parent=0 // pred_check
    _
  $region27: #{cnn_forward.5} parent=0 // pred_check_branch
    %25 = sbr.rel (0) target = $region29
  $region28: #{cnn_forward.5} parent=0 // pred_region
    _
  $region29: #{cnn_forward.5} parent=0 // pred_fallthru
    _
  %v26 = vld [vmem:[%s0] sm:$0xff]
  %v27 = vld [vmem:[%s0 + $0x8] sm:$0xff]
  %v28 = vld [vmem:[%s0 + $0x10] sm:$0xff]
  %v29 = vld [vmem:[%s0 + $0x18] sm:$0xff]
  %v30 = vld [vmem:[%s1] sm:$0xff]
  %v31 = vld [vmem:[%s1 + $0x8] sm:$0xff]
  %v32 = vld [vmem:[%s1 + $0x10] sm:$0xff]
  %v33 = vld [vmem:[%s1 + $0x18] sm:$0xff]
  %v34 = vld [vmem:[%s1 + $0x20] sm:$0xff]
  %v35 = vld [vmem:[%s1 + $0x28] sm:$0xff]
  %v36 = vld [vmem:[%s1 + $0x30] sm:$0xff]
  %v37 = vld [vmem:[%s1 + $0x38] sm:$0xff]
  %v38 = vld [vmem:[%s1 + $0x40] sm:$0xff]
  %v39 = vld [vmem:[%s1 + $0x48] sm:$0xff]
  %v40 = vld [vmem:[%s1 + $0x50] sm:$0xff]
  %v41 = vld [vmem:[%s1 + $0x58] sm:$0xff]
  %v42 = vld [vmem:[%s1 + $0x60] sm:$0xff]
  %v43 = vld [vmem:[%s1 + $0x68] sm:$0xff]
  %v44 = vld [vmem:[%s1 + $0x70] sm:$0xff]
  %v45 = vld [vmem:[%s1 + $0x78] sm:$0xff]
  %v46 = vld [vmem:[%s1 + $0x80] sm:$0xff]
  %v47 = vld [vmem:[%s1 + $0x88] sm:$0xff]
  %v48 = vld [vmem:[%s1 + $0x90] sm:$0xff]
  %v49 = vld [vmem:[%s1 + $0x98] sm:$0xff]
  %v50 = vld [vmem:[%s1 + $0xa0] sm:$0xff]
  %v51 = vld [vmem:[%s1 + $0xa8] sm:$0xff]
  %v52 = vld [vmem:[%s1 + $0xb0] sm:$0xff]
  %v53 = vld [vmem:[%s1 + $0xb8] sm:$0xff]
  %v54 = vld [vmem:[%s1 + $0xc0] sm:$0xff]
  %v55 = vld [vmem:[%s1 + $0xc8] sm:$0xff]
  %v56 = vld [vmem:[%s1 + $0xd0] sm:$0xff]
  %v57 = vld [vmem:[%s1 + $0xd8] sm:$0xff]
  %v58 = vld [vmem:[%s1 + $0xe0] sm:$0xff]
  %v59 = vld [vmem:[%s1 + $0xe8] sm:$0xff]
  %v60 = vld [vmem:[%s1 + $0xf0] sm:$0xff]
  %v61 = vld [vmem:[%s1 + $0xf8] sm:$0xff]
  %v62 = vld [vmem:[%s1 + $0x100] sm:$0xff]
  %v63 = vld [vmem:[%s1 + $0x108] sm:$0xff]
  %v64 = vld [vmem:[%s1 + $0x110] sm:$0xff]
  %v65 = vld [vmem:[%s1 + $0x118] sm:$0xff]
  %v66 = vld [vmem:[%s1 + $0x120] sm:$0xff]
  %v67 = vld [vmem:[%s1 + $0x128] sm:$0xff]
  %v68 = vld [vmem:[%s1 + $0x130] sm:$0xff]
  %v69 = vld [vmem:[%s1 + $0x138] sm:$0xff]
  %v70 = vld [vmem:[%s1 + $0x140] sm:$0xff]
  %v71 = vld [vmem:[%s1 + $0x148] sm:$0xff]
  %v72 = vld [vmem:[%s1 + $0x150] sm:$0xff]
  %v73 = vld [vmem:[%s1 + $0x158] sm:$0xff]
  %v74 = vld [vmem:[%s1 + $0x160] sm:$0xff]
  %v75 = vld [vmem:[%s1 + $0x168] sm:$0xff]
  %v76 = vld [vmem:[%s1 + $0x170] sm:$0xff]
  %v77 = vld [vmem:[%s1 + $0x178] sm:$0xff]
  %v78 = vld [vmem:[%s1 + $0x180] sm:$0xff]
  %v79 = vld [vmem:[%s1 + $0x188] sm:$0xff]
  %v80 = vld [vmem:[%s1 + $0x190] sm:$0xff]
  %v81 = vld [vmem:[%s1 + $0x198] sm:$0xff]
  %v82 = vld [vmem:[%s1 + $0x1a0] sm:$0xff]
  %v83 = vld [vmem:[%s1 + $0x1a8] sm:$0xff]
  %v84 = vld [vmem:[%s1 + $0x1b0] sm:$0xff]
  %v85 = vld [vmem:[%s1 + $0x1b8] sm:$0xff]
  %v86 = vld [vmem:[%s1 + $0x1c0] sm:$0xff]
  %v87 = vld [vmem:[%s1 + $0x1c8] sm:$0xff]
  %v88 = vld [vmem:[%s1 + $0x1d0] sm:$0xff]
  %v89 = vld [vmem:[%s1 + $0x1d8] sm:$0xff]
  %v90 = vld [vmem:[%s1 + $0x1e0] sm:$0xff]
  %v91 = vld [vmem:[%s1 + $0x1e8] sm:$0xff]
  %v92 = vld [vmem:[%s1 + $0x1f0] sm:$0xff]
  %v93 = vld [vmem:[%s1 + $0x1f8] sm:$0xff]
  %v94 = vld [vmem:[%s2] sm:$0x1]
  %v96 = vlaneseq
  %v97 = vshrl.u32 %v96, 7
  %v98 = vsub.s32 0, %v97
  %v99 = vrot.slane %v94, %v98
  %101 = vmatprep.subr.mxu0 0.0
  %102 = vmatpush1.msra.mxu0 %v30
  %103 = vmatprep.subr.mxu0 0.0
  %104 = vmatpush1.msra.mxu0 %v31
  %105 = vmatprep.subr.mxu0 0.0
  %106 = vmatpush1.msra.mxu0 %v32
  %107 = vmatprep.subr.mxu0 0.0
  %108 = vmatpush1.msra.mxu0 %v33
  %109 = vmatprep.subr.mxu0 0.0
  %110 = vmatpush1.msra.mxu0 %v34
  %111 = vmatprep.subr.mxu0 0.0
  %112 = vmatpush1.msra.mxu0 %v35
  %113 = vmatprep.subr.mxu0 0.0
  %114 = vmatpush1.msra.mxu0 %v36
  %115 = vmatprep.subr.mxu0 0.0
  %116 = vmatpush1.msra.mxu0 %v37
  %117 = vmatprep.subr.mxu0 0.0
  %118 = vmatpush1.msra.mxu0 %v38
  %119 = vmatprep.subr.mxu0 0.0
  %120 = vmatpush1.msra.mxu0 %v39
  %121 = vmatprep.subr.mxu0 0.0
  %122 = vmatpush1.msra.mxu0 %v40
  %123 = vmatprep.subr.mxu0 0.0
  %124 = vmatpush1.msra.mxu0 %v41
  %125 = vmatprep.subr.mxu0 0.0
  %126 = vmatpush1.msra.mxu0 %v42
  %127 = vmatprep.subr.mxu0 0.0
  %128 = vmatpush1.msra.mxu0 %v43
  %129 = vmatprep.subr.mxu0 0.0
  %130 = vmatpush1.msra.mxu0 %v44
  %131 = vmatprep.subr.mxu0 0.0
  %132 = vmatpush1.msra.mxu0 %v45
  %133 = vmatprep.subr.mxu0 0.0
  %134 = vmatpush1.msra.mxu0 %v46
  %135 = vmatprep.subr.mxu0 0.0
  %136 = vmatpush1.msra.mxu0 %v47
  %137 = vmatprep.subr.mxu0 0.0
  %138 = vmatpush1.msra.mxu0 %v48
  %139 = vmatprep.subr.mxu0 0.0
  %140 = vmatpush1.msra.mxu0 %v49
  %141 = vmatprep.subr.mxu0 0.0
  %142 = vmatpush1.msra.mxu0 %v50
  %143 = vmatprep.subr.mxu0 0.0
  %144 = vmatpush1.msra.mxu0 %v51
  %145 = vmatprep.subr.mxu0 0.0
  %146 = vmatpush1.msra.mxu0 %v52
  %147 = vmatprep.subr.mxu0 0.0
  %148 = vmatpush1.msra.mxu0 %v53
  %149 = vmatprep.subr.mxu0 0.0
  %150 = vmatpush1.msra.mxu0 %v54
  %151 = vmatprep.subr.mxu0 0.0
  %152 = vmatpush1.msra.mxu0 %v55
  %153 = vmatprep.subr.mxu0 0.0
  %154 = vmatpush1.msra.mxu0 %v56
  %155 = vmatprep.subr.mxu0 0.0
  %156 = vmatpush1.msra.mxu0 %v57
  %157 = vmatprep.subr.mxu0 0.0
  %158 = vmatpush1.msra.mxu0 %v58
  %159 = vmatprep.subr.mxu0 0.0
  %160 = vmatpush1.msra.mxu0 %v59
  %161 = vmatprep.subr.mxu0 0.0
  %162 = vmatpush1.msra.mxu0 %v60
  %163 = vmatprep.subr.mxu0 0.0
  %164 = vmatpush1.msra.mxu0 %v61
  %165 = vmatprep.mubr.f32.mxu0 %v27
  %166 = vmatmul.mubr.f32.gmra.mrb[0].mxu0 %v26
  %v167 = vpop.f32.mrb[0].mxu0
  %v168 = vadd.f32 %v99, %v167
  %v169 = vpop.f32.mrb[0].mxu0
  %170 = vdwg.mxu0
  %171 = vmatprep.subr.mxu0 0.0
  %172 = vmatpush1.msra.mxu0 %v62
  %173 = vmatprep.subr.mxu0 0.0
  %174 = vmatpush1.msra.mxu0 %v63
  %175 = vmatprep.subr.mxu0 0.0
  %176 = vmatpush1.msra.mxu0 %v64
  %177 = vmatprep.subr.mxu0 0.0
  %178 = vmatpush1.msra.mxu0 %v65
  %179 = vmatprep.subr.mxu0 0.0
  %180 = vmatpush1.msra.mxu0 %v66
  %181 = vmatprep.subr.mxu0 0.0
  %182 = vmatpush1.msra.mxu0 %v67
  %183 = vmatprep.subr.mxu0 0.0
  %184 = vmatpush1.msra.mxu0 %v68
  %185 = vmatprep.subr.mxu0 0.0
  %186 = vmatpush1.msra.mxu0 %v69
  %187 = vmatprep.subr.mxu0 0.0
  %188 = vmatpush1.msra.mxu0 %v70
  %189 = vmatprep.subr.mxu0 0.0
  %190 = vmatpush1.msra.mxu0 %v71
  %191 = vmatprep.subr.mxu0 0.0
  %192 = vmatpush1.msra.mxu0 %v72
  %193 = vmatprep.subr.mxu0 0.0
  %194 = vmatpush1.msra.mxu0 %v73
  %195 = vmatprep.subr.mxu0 0.0
  %196 = vmatpush1.msra.mxu0 %v74
  %197 = vmatprep.subr.mxu0 0.0
  %198 = vmatpush1.msra.mxu0 %v75
  %199 = vmatprep.subr.mxu0 0.0
  %200 = vmatpush1.msra.mxu0 %v76
  %201 = vmatprep.subr.mxu0 0.0
  %202 = vmatpush1.msra.mxu0 %v77
  %203 = vmatprep.subr.mxu0 0.0
  %204 = vmatpush1.msra.mxu0 %v78
  %205 = vmatprep.subr.mxu0 0.0
  %206 = vmatpush1.msra.mxu0 %v79
  %207 = vmatprep.subr.mxu0 0.0
  %208 = vmatpush1.msra.mxu0 %v80
  %209 = vmatprep.subr.mxu0 0.0
  %210 = vmatpush1.msra.mxu0 %v81
  %211 = vmatprep.subr.mxu0 0.0
  %212 = vmatpush1.msra.mxu0 %v82
  %213 = vmatprep.subr.mxu0 0.0
  %214 = vmatpush1.msra.mxu0 %v83
  %215 = vmatprep.subr.mxu0 0.0
  %216 = vmatpush1.msra.mxu0 %v84
  %217 = vmatprep.subr.mxu0 0.0
  %218 = vmatpush1.msra.mxu0 %v85
  %219 = vmatprep.subr.mxu0 0.0
  %220 = vmatpush1.msra.mxu0 %v86
  %221 = vmatprep.subr.mxu0 0.0
  %222 = vmatpush1.msra.mxu0 %v87
  %223 = vmatprep.subr.mxu0 0.0
  %224 = vmatpush1.msra.mxu0 %v88
  %225 = vmatprep.subr.mxu0 0.0
  %226 = vmatpush1.msra.mxu0 %v89
  %227 = vmatprep.subr.mxu0 0.0
  %228 = vmatpush1.msra.mxu0 %v90
  %229 = vmatprep.subr.mxu0 0.0
  %230 = vmatpush1.msra.mxu0 %v91
  %231 = vmatprep.subr.mxu0 0.0
  %232 = vmatpush1.msra.mxu0 %v92
  %233 = vmatprep.subr.mxu0 0.0
  %234 = vmatpush1.msra.mxu0 %v93
  %235 = vmatprep.mubr.f32.mxu0 %v29
  %236 = vmatmul.mubr.f32.gmra.mrb[0].mxu0 %v28
  %v237 = vpop.f32.mrb[0].mxu0
  %v238 = vadd.f32 %v168, %v237
  %v239 = vpop.f32.mrb[0].mxu0
  %240 = vdwg.mxu0
  %v241 = vmax.f32 %v238, 0.0
  %v242 = vld [vmem:[%s3] sm:$0xff]
  %v243 = vld [vmem:[%s3 + $0x8] sm:$0xff]
  %v244 = vld [vmem:[%s3 + $0x10] sm:$0xff]
  %v245 = vld [vmem:[%s3 + $0x18] sm:$0xff]
  %v246 = vld [vmem:[%s3 + $0x20] sm:$0xff]
  %v247 = vld [vmem:[%s3 + $0x28] sm:$0xff]
  %v248 = vld [vmem:[%s3 + $0x30] sm:$0xff]
  %v249 = vld [vmem:[%s3 + $0x38] sm:$0xff]
  %v250 = vld [vmem:[%s3 + $0x40] sm:$0xff]
  %v251 = vld [vmem:[%s3 + $0x48] sm:$0xff]
  %v252 = vld [vmem:[%s3 + $0x50] sm:$0xff]
  %v253 = vld [vmem:[%s3 + $0x58] sm:$0xff]
  %v254 = vld [vmem:[%s3 + $0x60] sm:$0xff]
  %v255 = vld [vmem:[%s3 + $0x68] sm:$0xff]
  %v256 = vld [vmem:[%s3 + $0x70] sm:$0xff]
  %v257 = vld [vmem:[%s3 + $0x78] sm:$0xff]
  %v258 = vld [vmem:[%s4] sm:$0x1]
  %v260 = vlaneseq
  %v261 = vshrl.u32 %v260, 7
  %v262 = vsub.s32 0, %v261
  %v263 = vrot.slane %v258, %v262
  %265 = vmatprep.subr.mxu0 0.0
  %266 = vmatpush1.msra.mxu0 %v242
  %267 = vmatprep.subr.mxu0 0.0
  %268 = vmatpush1.msra.mxu0 %v243
  %269 = vmatprep.subr.mxu0 0.0
  %270 = vmatpush1.msra.mxu0 %v244
  %271 = vmatprep.subr.mxu0 0.0
  %272 = vmatpush1.msra.mxu0 %v245
  %273 = vmatprep.subr.mxu0 0.0
  %274 = vmatpush1.msra.mxu0 %v246
  %275 = vmatprep.subr.mxu0 0.0
  %276 = vmatpush1.msra.mxu0 %v247
  %277 = vmatprep.subr.mxu0 0.0
  %278 = vmatpush1.msra.mxu0 %v248
  %279 = vmatprep.subr.mxu0 0.0
  %280 = vmatpush1.msra.mxu0 %v249
  %281 = vmatprep.subr.mxu0 0.0
  %282 = vmatpush1.msra.mxu0 %v250
  %283 = vmatprep.subr.mxu0 0.0
  %284 = vmatpush1.msra.mxu0 %v251
  %285 = vmatprep.subr.mxu0 0.0
  %286 = vmatpush1.msra.mxu0 %v252
  %287 = vmatprep.subr.mxu0 0.0
  %288 = vmatpush1.msra.mxu0 %v253
  %289 = vmatprep.subr.mxu0 0.0
  %290 = vmatpush1.msra.mxu0 %v254
  %291 = vmatprep.subr.mxu0 0.0
  %292 = vmatpush1.msra.mxu0 %v255
  %293 = vmatprep.subr.mxu0 0.0
  %294 = vmatpush1.msra.mxu0 %v256
  %295 = vmatprep.subr.mxu0 0.0
  %296 = vmatpush1.msra.mxu0 %v257
  %297 = vmatprep.subr.mxu0 0.0
  %298 = vmatpush1.msra.mxu0 0.0
  %299 = vmatprep.subr.mxu0 0.0
  %300 = vmatpush1.msra.mxu0 0.0
  %301 = vmatprep.subr.mxu0 0.0
  %302 = vmatpush1.msra.mxu0 0.0
  %303 = vmatprep.subr.mxu0 0.0
  %304 = vmatpush1.msra.mxu0 0.0
  %305 = vmatprep.subr.mxu0 0.0
  %306 = vmatpush1.msra.mxu0 0.0
  %307 = vmatprep.subr.mxu0 0.0
  %308 = vmatpush1.msra.mxu0 0.0
  %309 = vmatprep.subr.mxu0 0.0
  %310 = vmatpush1.msra.mxu0 0.0
  %311 = vmatprep.subr.mxu0 0.0
  %312 = vmatpush1.msra.mxu0 0.0
  %313 = vmatprep.subr.mxu0 0.0
  %314 = vmatpush1.msra.mxu0 0.0
  %315 = vmatprep.subr.mxu0 0.0
  %316 = vmatpush1.msra.mxu0 0.0
  %317 = vmatprep.subr.mxu0 0.0
  %318 = vmatpush1.msra.mxu0 0.0
  %319 = vmatprep.subr.mxu0 0.0
  %320 = vmatpush1.msra.mxu0 0.0
  %321 = vmatprep.subr.mxu0 0.0
  %322 = vmatpush1.msra.mxu0 0.0
  %323 = vmatprep.subr.mxu0 0.0
  %324 = vmatpush1.msra.mxu0 0.0
  %325 = vmatprep.subr.mxu0 0.0
  %326 = vmatpush1.msra.mxu0 0.0
  %327 = vmatprep.subr.mxu0 0.0
  %328 = vmatpush1.msra.mxu0 0.0
  %329 = vmatprep.mubr.f32.mxu0 0.0
  %330 = vmatmul.mubr.f32.gmra.mrb[0].mxu0 %v241
  %v331 = vpop.f32.mrb[0].mxu0
  %v332 = vadd.f32 %v263, %v331
  %v333 = vpop.f32.mrb[0].mxu0
  %334 = vdwg.mxu0
  %v335 = vmax.f32 %v332, 0.0
  %v336 = vld [vmem:[%s5] sm:$0xff]
  %v337 = vld [vmem:[%s5 + $0x8] sm:$0xff]
  %v338 = vld [vmem:[%s5 + $0x10] sm:$0xff]
  %v339 = vld [vmem:[%s5 + $0x18] sm:$0xff]
  %v340 = vld [vmem:[%s5 + $0x20] sm:$0xff]
  %v341 = vld [vmem:[%s5 + $0x28] sm:$0xff]
  %v342 = vld [vmem:[%s5 + $0x30] sm:$0xff]
  %v343 = vld [vmem:[%s5 + $0x38] sm:$0xff]
  %v344 = vld [vmem:[%s5 + $0x40] sm:$0xff]
  %v345 = vld [vmem:[%s5 + $0x48] sm:$0xff]
  %v346 = vld [vmem:[%s5 + $0x50] sm:$0xff]
  %v347 = vld [vmem:[%s5 + $0x58] sm:$0xff]
  %v348 = vld [vmem:[%s5 + $0x60] sm:$0xff]
  %v349 = vld [vmem:[%s5 + $0x68] sm:$0xff]
  %v350 = vld [vmem:[%s5 + $0x70] sm:$0xff]
  %v351 = vld [vmem:[%s5 + $0x78] sm:$0xff]
  %v352 = vld [vmem:[%s6] sm:$0x1]
  %v354 = vlaneseq
  %v355 = vshrl.u32 %v354, 7
  %v356 = vsub.s32 0, %v355
  %v357 = vrot.slane %v352, %v356
  %359 = vmatprep.subr.mxu0 0.0
  %360 = vmatpush1.msra.mxu0 %v336
  %361 = vmatprep.subr.mxu0 0.0
  %362 = vmatpush1.msra.mxu0 %v337
  %363 = vmatprep.subr.mxu0 0.0
  %364 = vmatpush1.msra.mxu0 %v338
  %365 = vmatprep.subr.mxu0 0.0
  %366 = vmatpush1.msra.mxu0 %v339
  %367 = vmatprep.subr.mxu0 0.0
  %368 = vmatpush1.msra.mxu0 %v340
  %369 = vmatprep.subr.mxu0 0.0
  %370 = vmatpush1.msra.mxu0 %v341
  %371 = vmatprep.subr.mxu0 0.0
  %372 = vmatpush1.msra.mxu0 %v342
  %373 = vmatprep.subr.mxu0 0.0
  %374 = vmatpush1.msra.mxu0 %v343
  %375 = vmatprep.subr.mxu0 0.0
  %376 = vmatpush1.msra.mxu0 %v344
  %377 = vmatprep.subr.mxu0 0.0
  %378 = vmatpush1.msra.mxu0 %v345
  %379 = vmatprep.subr.mxu0 0.0
  %380 = vmatpush1.msra.mxu0 %v346
  %381 = vmatprep.subr.mxu0 0.0
  %382 = vmatpush1.msra.mxu0 %v347
  %383 = vmatprep.subr.mxu0 0.0
  %384 = vmatpush1.msra.mxu0 %v348
  %385 = vmatprep.subr.mxu0 0.0
  %386 = vmatpush1.msra.mxu0 %v349
  %387 = vmatprep.subr.mxu0 0.0
  %388 = vmatpush1.msra.mxu0 %v350
  %389 = vmatprep.subr.mxu0 0.0
  %390 = vmatpush1.msra.mxu0 %v351
  %391 = vmatprep.subr.mxu0 0.0
  %392 = vmatpush1.msra.mxu0 0.0
  %393 = vmatprep.subr.mxu0 0.0
  %394 = vmatpush1.msra.mxu0 0.0
  %395 = vmatprep.subr.mxu0 0.0
  %396 = vmatpush1.msra.mxu0 0.0
  %397 = vmatprep.subr.mxu0 0.0
  %398 = vmatpush1.msra.mxu0 0.0
  %399 = vmatprep.subr.mxu0 0.0
  %400 = vmatpush1.msra.mxu0 0.0
  %401 = vmatprep.subr.mxu0 0.0
  %402 = vmatpush1.msra.mxu0 0.0
  %403 = vmatprep.subr.mxu0 0.0
  %404 = vmatpush1.msra.mxu0 0.0
  %405 = vmatprep.subr.mxu0 0.0
  %406 = vmatpush1.msra.mxu0 0.0
  %407 = vmatprep.subr.mxu0 0.0
  %408 = vmatpush1.msra.mxu0 0.0
  %409 = vmatprep.subr.mxu0 0.0
  %410 = vmatpush1.msra.mxu0 0.0
  %411 = vmatprep.subr.mxu0 0.0
  %412 = vmatpush1.msra.mxu0 0.0
  %413 = vmatprep.subr.mxu0 0.0
  %414 = vmatpush1.msra.mxu0 0.0
  %415 = vmatprep.subr.mxu0 0.0
  %416 = vmatpush1.msra.mxu0 0.0
  %417 = vmatprep.subr.mxu0 0.0
  %418 = vmatpush1.msra.mxu0 0.0
  %419 = vmatprep.subr.mxu0 0.0
  %420 = vmatpush1.msra.mxu0 0.0
  %421 = vmatprep.subr.mxu0 0.0
  %422 = vmatpush1.msra.mxu0 0.0
  %423 = vmatprep.mubr.f32.mxu0 0.0
  %424 = vmatmul.mubr.f32.gmra.mrb[0].mxu0 %v335
  %v425 = vpop.f32.mrb[0].mxu0
  %v426 = vadd.f32 %v357, %v425
  %v427 = vpop.f32.mrb[0].mxu0
  %428 = vdwg.mxu0
  %429 = vst [vmem:[%s7] sm:$0xff] %v426
  // Predicated region
  $region30: #{cnn_forward.5} parent=0 // pred_check
    _
  $region31: #{cnn_forward.5} parent=0 // pred_check_branch
    %431 = sbr.rel (0) target = $region33
  $region32: #{cnn_forward.5} parent=0 // pred_region
    _
  $region33: #{cnn_forward.5} parent=0 // pred_fallthru
    _
  // Predicated region
  $region34: #{cnn_forward.5} parent=0 // pred_check
    _
  $region35: #{cnn_forward.5} parent=0 // pred_check_branch
    %433 = sbr.rel (0) target = $region37
  $region36: #{cnn_forward.5} parent=0 // pred_region
    _
  $region37: #{cnn_forward.5} parent=0 // pred_fallthru
    _

</llo_original>
